<compile_context>
chip_gen: v5e
topology: v5e:2x2
jax: 0.10.0
libtpu: 0.0.40
codegen_flags: <defaults>
</compile_context>

<pallas_src>
import functools

import jax
import jax.numpy as jnp
from jax import lax
from jax.experimental import pallas as pl
from jax.experimental.pallas import tpu as pltpu


def _fused_conv_kernel(x_ref, b1m_ref, b1v_ref, b2m_ref, b2v_ref, o_ref, *,
                       kh1, kh2, ho1, ho2):
    # x_ref  : (1, H, W)              one batch element (Cin == 1)
    # b1m_ref: (kh1, W, Wo1*C1)       banded conv1 weights, one slab per height tap
    # b1v_ref: (1, Wo1*C1)            conv1 bias tiled over output width
    # b2m_ref: (kh2, Wo1*C1, Wo2*C2)  banded conv2 weights
    # b2v_ref: (1, Wo2*C2)            conv2 bias tiled over output width
    # o_ref  : (1, Ho2, Wo2*C2)       lane-dense fused (width, channel) output
    x = x_ref[0]                                              # (H, W)

    # ---- conv1 + ReLU: 2-D accumulator (Ho1, Wo1*C1), 5 MXU matmuls ----
    cols1 = b1m_ref.shape[2]
    acc1 = jnp.broadcast_to(b1v_ref[...], (ho1, cols1))       # bias init (hoisted)
    for di in range(kh1):                                     # static, 5 taps
        acc1 = acc1 + jnp.dot(x[di:di + ho1, :], b1m_ref[di],
                              preferred_element_type=jnp.float32)
    y1 = jnp.maximum(acc1, 0.0)                               # (Ho1, Wo1*C1) stays in VMEM

    # ---- conv2 + ReLU: contraction over Wo1*C1 = 240 (near-full MXU tile) ----
    cols2 = b2m_ref.shape[2]
    acc2 = jnp.broadcast_to(b2v_ref[...], (ho2, cols2))
    for di in range(kh2):                                     # static, 5 taps
        acc2 = acc2 + jnp.dot(y1[di:di + ho2, :], b2m_ref[di],
                              preferred_element_type=jnp.float32)
    o_ref[0] = jnp.maximum(acc2, 0.0)                         # unmasked (8, 512) store


def prepare_params(w1_hwio, b1, w2_hwio, b2, h, w):
    """One-time (model-load) weight layout change into banded matmul form."""
    kh1, kw1, cin1, c1 = w1_hwio.shape
    kh2, kw2, _, c2 = w2_hwio.shape
    assert cin1 == 1
    wo1 = w - kw1 + 1
    wo2 = wo1 - kw2 + 1

    # B1[di, wi, j*C1 + c] = w1[di, wi - j, 0, c]   (0 <= wi - j < kw1)
    dj = jnp.arange(w)[:, None] - jnp.arange(wo1)[None, :]          # (W, Wo1)
    valid = (dj >= 0) & (dj < kw1)
    djc = jnp.clip(dj, 0, kw1 - 1)
    w1s = w1_hwio[:, :, 0, :]                                       # (kh1, kw1, C1)
    b1m = jnp.where(valid[None, :, :, None], w1s[:, djc, :], 0.0)   # (kh1, W, Wo1, C1)
    b1m = b1m.reshape(kh1, w, wo1 * c1).astype(jnp.float32)
    b1v = jnp.tile(b1, wo1).reshape(1, wo1 * c1).astype(jnp.float32)

    # B2[di, wi*C1 + ci, j*C2 + co] = w2[di, wi - j, ci, co]   (0 <= wi - j < kw2)
    dj2 = jnp.arange(wo1)[:, None] - jnp.arange(wo2)[None, :]       # (Wo1, Wo2)
    valid2 = (dj2 >= 0) & (dj2 < kw2)
    djc2 = jnp.clip(dj2, 0, kw2 - 1)
    t = jnp.where(valid2[None, :, :, None, None],
                  w2_hwio[:, djc2, :, :], 0.0)                      # (kh2, Wo1, Wo2, C1, C2)
    b2m = jnp.transpose(t, (0, 1, 3, 2, 4)).reshape(
        kh2, wo1 * c1, wo2 * c2).astype(jnp.float32)
    b2v = jnp.tile(b2, wo2).reshape(1, wo2 * c2).astype(jnp.float32)

    dims = (kh1, kh2, h - kh1 + 1, h - kh1 - kh2 + 2, wo2, c2)      # static ints
    return (b1m, b1v, b2m, b2v), dims


@functools.partial(jax.jit, static_argnames=("dims",))
def simple_model_forward(x_nchw, params, dims):
    """Matches SimpleModel.forward: relu(conv1(x)) -> relu(conv2(.)), NCHW in/out."""
    b1m, b1v, b2m, b2v = params
    kh1, kh2, ho1, ho2, wo2, c2 = dims
    n, cin, h, w = x_nchw.shape
    # Cin == 1 -> dropping the channel axis is a free reshape (no transpose).
    x = x_nchw.reshape(n, h, w).astype(jnp.float32)

    cols2 = wo2 * c2
    kernel = functools.partial(_fused_conv_kernel,
                               kh1=kh1, kh2=kh2, ho1=ho1, ho2=ho2)
    out = pl.pallas_call(
        kernel,
        out_shape=jax.ShapeDtypeStruct((n, ho2, cols2), jnp.float32),
        grid=(n,),
        in_specs=[
            pl.BlockSpec((1, h, w), lambda i: (i, 0, 0)),      # per-batch block
            pl.BlockSpec(b1m.shape, lambda i: (0, 0, 0)),      # weights: constant block
            pl.BlockSpec(b1v.shape, lambda i: (0, 0)),         #   (not re-DMA'd per step)
            pl.BlockSpec(b2m.shape, lambda i: (0, 0, 0)),
            pl.BlockSpec(b2v.shape, lambda i: (0, 0)),
        ],
        out_specs=pl.BlockSpec((1, ho2, cols2), lambda i: (i, 0, 0)),
        compiler_params=pltpu.CompilerParams(
            dimension_semantics=("parallel",)),                # batch across TCs on v7x
    )(x, b1m, b1v, b2m, b2v)                                   # (N, Ho2, Wo2*C2)

    # Free reshape + one tiny (32 KiB) XLA transpose back to PyTorch NCHW.
    return out.reshape(n, ho2, wo2, c2).transpose(0, 3, 1, 2)


def init_params(key):
    # PyTorch Conv2d shapes, stored HWIO:
    # conv1: weight (20, 1, 5, 5), bias (20,)   -> HWIO (5, 5, 1, 20)
    # conv2: weight (64, 20, 5, 5), bias (64,)  -> HWIO (5, 5, 20, 64)
    k1, k2, k3, k4 = jax.random.split(key, 4)
    fan1 = 1 * 5 * 5
    fan2 = 20 * 5 * 5
    w1 = jax.random.uniform(k1, (5, 5, 1, 20), jnp.float32,
                            -1.0 / fan1 ** 0.5, 1.0 / fan1 ** 0.5)
    b1 = jax.random.uniform(k2, (20,), jnp.float32,
                            -1.0 / fan1 ** 0.5, 1.0 / fan1 ** 0.5)
    w2 = jax.random.uniform(k3, (5, 5, 20, 64), jnp.float32,
                            -1.0 / fan2 ** 0.5, 1.0 / fan2 ** 0.5)
    b2 = jax.random.uniform(k4, (64,), jnp.float32,
                            -1.0 / fan2 ** 0.5, 1.0 / fan2 ** 0.5)
    return w1, b1, w2, b2


def ref_forward(x_nchw, params):
    w1, b1, w2, b2 = params
    y = lax.conv_general_dilated(
        x_nchw, w1, (1, 1), "VALID",
        dimension_numbers=("NCHW", "HWIO", "NCHW"))
    y = jnp.maximum(y + b1[None, :, None, None], 0.0)
    y = lax.conv_general_dilated(
        y, w2, (1, 1), "VALID",
        dimension_numbers=("NCHW", "HWIO", "NCHW"))
    return jnp.maximum(y + b2[None, :, None, None], 0.0)


if __name__ == "__main__":
    key = jax.random.PRNGKey(0)
    pkey, xkey = jax.random.split(key)
    w1, b1, w2, b2 = init_params(pkey)

    # Input consistent with Conv2d(1, ...): N=2, C=1, H=W=16 (NCHW, like PyTorch).
    x = jax.random.normal(xkey, (2, 1, 16, 16), jnp.float32)

    params, dims = prepare_params(w1, b1, w2, b2, h=16, w=16)
    out = simple_model_forward(x, params, dims=dims)
    out = jax.block_until_ready(out)

    # Sanity checks: shape (2, 64, 8, 8), ReLU => non-negative.
    assert out.shape == (2, 64, 8, 8), out.shape
    assert bool(jnp.all(out >= 0.0))

    # Cross-check against plain-JAX reference convolution.
    ref = ref_forward(x, (w1, b1, w2, b2))
    assert bool(jnp.allclose(out, ref, atol=1e-3, rtol=1e-3)), \
        float(jnp.max(jnp.abs(out - ref)))

    print("KERNEL_OK")
</pallas_src>

<mosaic_0001>
module attributes {stable_mosaic.version = 11 : i64} {
  func.func @_fused_conv_kernel(%arg0: i32, %arg1: memref<1x16x16xf32, #tpu.memory_space<vmem>>, %arg2: memref<5x16x240xf32, #tpu.memory_space<vmem>>, %arg3: memref<1x240xf32, #tpu.memory_space<vmem>>, %arg4: memref<5x240x512xf32, #tpu.memory_space<vmem>>, %arg5: memref<1x512xf32, #tpu.memory_space<vmem>>, %arg6: memref<1x8x512xf32, #tpu.memory_space<vmem>>) attributes {dimension_semantics = [#tpu.dimension_semantics<parallel>], iteration_bounds = array<i64: 2>, scalar_prefetch = 0 : i64, scratch_operands = 0 : i64, tpu.core_type = #tpu.core_type<tc>, window_params = [{transform_indices = @transform_0, window_bounds = array<i64: 1, 16, 16>}, {pipeline_mode = #tpu.pipeline_mode<synchronous>, transform_indices = @transform_1, window_bounds = array<i64: 5, 16, 240>}, {pipeline_mode = #tpu.pipeline_mode<synchronous>, transform_indices = @transform_2, window_bounds = array<i64: 1, 240>}, {pipeline_mode = #tpu.pipeline_mode<synchronous>, transform_indices = @transform_3, window_bounds = array<i64: 5, 240, 512>}, {pipeline_mode = #tpu.pipeline_mode<synchronous>, transform_indices = @transform_4, window_bounds = array<i64: 1, 512>}, {transform_indices = @transform_5, window_bounds = array<i64: 1, 8, 512>}]} {
    %c0 = arith.constant 0 : index
    %c0_0 = arith.constant 0 : index
    %c0_1 = arith.constant 0 : index
    %0 = vector.load %arg1[%c0, %c0_0, %c0_1] : memref<1x16x16xf32, #tpu.memory_space<vmem>>, vector<1x16x16xf32>
    %1 = vector.shape_cast %0 : vector<1x16x16xf32> to vector<16x16xf32>
    %c0_2 = arith.constant 0 : index
    %c0_3 = arith.constant 0 : index
    %2 = vector.load %arg3[%c0_2, %c0_3] : memref<1x240xf32, #tpu.memory_space<vmem>>, vector<1x240xf32>
    %3 = vector.shape_cast %2 : vector<1x240xf32> to vector<1x240xf32>
    %4 = vector.broadcast %3 : vector<1x240xf32> to vector<12x240xf32>
    %5 = vector.extract_strided_slice %1 {offsets = [0, 0], sizes = [12, 16], strides = [1, 1]} : vector<16x16xf32> to vector<12x16xf32>
    %c0_4 = arith.constant 0 : index
    %c0_5 = arith.constant 0 : index
    %c0_6 = arith.constant 0 : index
    %6 = vector.load %arg2[%c0_4, %c0_5, %c0_6] : memref<5x16x240xf32, #tpu.memory_space<vmem>>, vector<1x16x240xf32>
    %7 = vector.shape_cast %6 : vector<1x16x240xf32> to vector<16x240xf32>
    %cst = arith.constant dense<0.000000e+00> : vector<12x240xf32>
    %8 = tpu.matmul %5, %7, %cst {dimension_numbers = #tpu.dot_dimension_numbers<[1], [0], [0], [1], [0, 0, 1, 1], [], []>} : vector<12x16xf32>, vector<16x240xf32>, vector<12x240xf32> -> vector<12x240xf32>
    %9 = arith.addf %4, %8 : vector<12x240xf32>
    %10 = vector.extract_strided_slice %1 {offsets = [1, 0], sizes = [12, 16], strides = [1, 1]} : vector<16x16xf32> to vector<12x16xf32>
    %c1 = arith.constant 1 : index
    %c0_7 = arith.constant 0 : index
    %c0_8 = arith.constant 0 : index
    %11 = vector.load %arg2[%c1, %c0_7, %c0_8] : memref<5x16x240xf32, #tpu.memory_space<vmem>>, vector<1x16x240xf32>
    %12 = vector.shape_cast %11 : vector<1x16x240xf32> to vector<16x240xf32>
    %cst_9 = arith.constant dense<0.000000e+00> : vector<12x240xf32>
    %13 = tpu.matmul %10, %12, %cst_9 {dimension_numbers = #tpu.dot_dimension_numbers<[1], [0], [0], [1], [0, 0, 1, 1], [], []>} : vector<12x16xf32>, vector<16x240xf32>, vector<12x240xf32> -> vector<12x240xf32>
    %14 = arith.addf %9, %13 : vector<12x240xf32>
    %15 = vector.extract_strided_slice %1 {offsets = [2, 0], sizes = [12, 16], strides = [1, 1]} : vector<16x16xf32> to vector<12x16xf32>
    %c2 = arith.constant 2 : index
    %c0_10 = arith.constant 0 : index
    %c0_11 = arith.constant 0 : index
    %16 = vector.load %arg2[%c2, %c0_10, %c0_11] : memref<5x16x240xf32, #tpu.memory_space<vmem>>, vector<1x16x240xf32>
    %17 = vector.shape_cast %16 : vector<1x16x240xf32> to vector<16x240xf32>
    %cst_12 = arith.constant dense<0.000000e+00> : vector<12x240xf32>
    %18 = tpu.matmul %15, %17, %cst_12 {dimension_numbers = #tpu.dot_dimension_numbers<[1], [0], [0], [1], [0, 0, 1, 1], [], []>} : vector<12x16xf32>, vector<16x240xf32>, vector<12x240xf32> -> vector<12x240xf32>
    %19 = arith.addf %14, %18 : vector<12x240xf32>
    %20 = vector.extract_strided_slice %1 {offsets = [3, 0], sizes = [12, 16], strides = [1, 1]} : vector<16x16xf32> to vector<12x16xf32>
    %c3 = arith.constant 3 : index
    %c0_13 = arith.constant 0 : index
    %c0_14 = arith.constant 0 : index
    %21 = vector.load %arg2[%c3, %c0_13, %c0_14] : memref<5x16x240xf32, #tpu.memory_space<vmem>>, vector<1x16x240xf32>
    %22 = vector.shape_cast %21 : vector<1x16x240xf32> to vector<16x240xf32>
    %cst_15 = arith.constant dense<0.000000e+00> : vector<12x240xf32>
    %23 = tpu.matmul %20, %22, %cst_15 {dimension_numbers = #tpu.dot_dimension_numbers<[1], [0], [0], [1], [0, 0, 1, 1], [], []>} : vector<12x16xf32>, vector<16x240xf32>, vector<12x240xf32> -> vector<12x240xf32>
    %24 = arith.addf %19, %23 : vector<12x240xf32>
    %25 = vector.extract_strided_slice %1 {offsets = [4, 0], sizes = [12, 16], strides = [1, 1]} : vector<16x16xf32> to vector<12x16xf32>
    %c4 = arith.constant 4 : index
    %c0_16 = arith.constant 0 : index
    %c0_17 = arith.constant 0 : index
    %26 = vector.load %arg2[%c4, %c0_16, %c0_17] : memref<5x16x240xf32, #tpu.memory_space<vmem>>, vector<1x16x240xf32>
    %27 = vector.shape_cast %26 : vector<1x16x240xf32> to vector<16x240xf32>
    %cst_18 = arith.constant dense<0.000000e+00> : vector<12x240xf32>
    %28 = tpu.matmul %25, %27, %cst_18 {dimension_numbers = #tpu.dot_dimension_numbers<[1], [0], [0], [1], [0, 0, 1, 1], [], []>} : vector<12x16xf32>, vector<16x240xf32>, vector<12x240xf32> -> vector<12x240xf32>
    %29 = arith.addf %24, %28 : vector<12x240xf32>
    %cst_19 = arith.constant 0.000000e+00 : f32
    %30 = vector.broadcast %cst_19 : f32 to vector<12x240xf32>
    %31 = arith.maximumf %29, %30 : vector<12x240xf32>
    %c0_20 = arith.constant 0 : index
    %c0_21 = arith.constant 0 : index
    %32 = vector.load %arg5[%c0_20, %c0_21] : memref<1x512xf32, #tpu.memory_space<vmem>>, vector<1x512xf32>
    %33 = vector.shape_cast %32 : vector<1x512xf32> to vector<1x512xf32>
    %34 = vector.broadcast %33 : vector<1x512xf32> to vector<8x512xf32>
    %35 = vector.extract_strided_slice %31 {offsets = [0, 0], sizes = [8, 240], strides = [1, 1]} : vector<12x240xf32> to vector<8x240xf32>
    %c0_22 = arith.constant 0 : index
    %c0_23 = arith.constant 0 : index
    %c0_24 = arith.constant 0 : index
    %36 = vector.load %arg4[%c0_22, %c0_23, %c0_24] : memref<5x240x512xf32, #tpu.memory_space<vmem>>, vector<1x240x512xf32>
    %37 = vector.shape_cast %36 : vector<1x240x512xf32> to vector<240x512xf32>
    %cst_25 = arith.constant dense<0.000000e+00> : vector<8x512xf32>
    %38 = tpu.matmul %35, %37, %cst_25 {dimension_numbers = #tpu.dot_dimension_numbers<[1], [0], [0], [1], [0, 0, 1, 1], [], []>} : vector<8x240xf32>, vector<240x512xf32>, vector<8x512xf32> -> vector<8x512xf32>
    %39 = arith.addf %34, %38 : vector<8x512xf32>
    %40 = vector.extract_strided_slice %31 {offsets = [1, 0], sizes = [8, 240], strides = [1, 1]} : vector<12x240xf32> to vector<8x240xf32>
    %c1_26 = arith.constant 1 : index
    %c0_27 = arith.constant 0 : index
    %c0_28 = arith.constant 0 : index
    %41 = vector.load %arg4[%c1_26, %c0_27, %c0_28] : memref<5x240x512xf32, #tpu.memory_space<vmem>>, vector<1x240x512xf32>
    %42 = vector.shape_cast %41 : vector<1x240x512xf32> to vector<240x512xf32>
    %cst_29 = arith.constant dense<0.000000e+00> : vector<8x512xf32>
    %43 = tpu.matmul %40, %42, %cst_29 {dimension_numbers = #tpu.dot_dimension_numbers<[1], [0], [0], [1], [0, 0, 1, 1], [], []>} : vector<8x240xf32>, vector<240x512xf32>, vector<8x512xf32> -> vector<8x512xf32>
    %44 = arith.addf %39, %43 : vector<8x512xf32>
    %45 = vector.extract_strided_slice %31 {offsets = [2, 0], sizes = [8, 240], strides = [1, 1]} : vector<12x240xf32> to vector<8x240xf32>
    %c2_30 = arith.constant 2 : index
    %c0_31 = arith.constant 0 : index
    %c0_32 = arith.constant 0 : index
    %46 = vector.load %arg4[%c2_30, %c0_31, %c0_32] : memref<5x240x512xf32, #tpu.memory_space<vmem>>, vector<1x240x512xf32>
    %47 = vector.shape_cast %46 : vector<1x240x512xf32> to vector<240x512xf32>
    %cst_33 = arith.constant dense<0.000000e+00> : vector<8x512xf32>
    %48 = tpu.matmul %45, %47, %cst_33 {dimension_numbers = #tpu.dot_dimension_numbers<[1], [0], [0], [1], [0, 0, 1, 1], [], []>} : vector<8x240xf32>, vector<240x512xf32>, vector<8x512xf32> -> vector<8x512xf32>
    %49 = arith.addf %44, %48 : vector<8x512xf32>
    %50 = vector.extract_strided_slice %31 {offsets = [3, 0], sizes = [8, 240], strides = [1, 1]} : vector<12x240xf32> to vector<8x240xf32>
    %c3_34 = arith.constant 3 : index
    %c0_35 = arith.constant 0 : index
    %c0_36 = arith.constant 0 : index
    %51 = vector.load %arg4[%c3_34, %c0_35, %c0_36] : memref<5x240x512xf32, #tpu.memory_space<vmem>>, vector<1x240x512xf32>
    %52 = vector.shape_cast %51 : vector<1x240x512xf32> to vector<240x512xf32>
    %cst_37 = arith.constant dense<0.000000e+00> : vector<8x512xf32>
    %53 = tpu.matmul %50, %52, %cst_37 {dimension_numbers = #tpu.dot_dimension_numbers<[1], [0], [0], [1], [0, 0, 1, 1], [], []>} : vector<8x240xf32>, vector<240x512xf32>, vector<8x512xf32> -> vector<8x512xf32>
    %54 = arith.addf %49, %53 : vector<8x512xf32>
    %55 = vector.extract_strided_slice %31 {offsets = [4, 0], sizes = [8, 240], strides = [1, 1]} : vector<12x240xf32> to vector<8x240xf32>
    %c4_38 = arith.constant 4 : index
    %c0_39 = arith.constant 0 : index
    %c0_40 = arith.constant 0 : index
    %56 = vector.load %arg4[%c4_38, %c0_39, %c0_40] : memref<5x240x512xf32, #tpu.memory_space<vmem>>, vector<1x240x512xf32>
    %57 = vector.shape_cast %56 : vector<1x240x512xf32> to vector<240x512xf32>
    %cst_41 = arith.constant dense<0.000000e+00> : vector<8x512xf32>
    %58 = tpu.matmul %55, %57, %cst_41 {dimension_numbers = #tpu.dot_dimension_numbers<[1], [0], [0], [1], [0, 0, 1, 1], [], []>} : vector<8x240xf32>, vector<240x512xf32>, vector<8x512xf32> -> vector<8x512xf32>
    %59 = arith.addf %54, %58 : vector<8x512xf32>
    %cst_42 = arith.constant 0.000000e+00 : f32
    %60 = vector.broadcast %cst_42 : f32 to vector<8x512xf32>
    %61 = arith.maximumf %59, %60 : vector<8x512xf32>
    %c0_43 = arith.constant 0 : index
    %c0_44 = arith.constant 0 : index
    %c0_45 = arith.constant 0 : index
    %62 = vector.load %arg6[%c0_43, %c0_44, %c0_45] : memref<1x8x512xf32, #tpu.memory_space<vmem>>, vector<1x8x512xf32>
    %63 = vector.shape_cast %62 : vector<1x8x512xf32> to vector<8x512xf32>
    %64 = vector.shape_cast %61 : vector<8x512xf32> to vector<1x8x512xf32>
    tpu.vector_store %arg6[%c0_43, %c0_44, %c0_45], %64 {strides = array<i32>} : memref<1x8x512xf32, #tpu.memory_space<vmem>>, vector<1x8x512xf32>,
    return
  }
  func.func @transform_0(%arg0: i32) -> (i32, i32, i32) {
    %c0_i32 = arith.constant 0 : i32
    %c0_i32_0 = arith.constant 0 : i32
    %c0_i32_1 = arith.constant 0 : i32
    return %arg0, %c0_i32, %c0_i32_0 : i32, i32, i32
  }
  func.func @transform_1(%arg0: i32) -> (i32, i32, i32) {
    %c0_i32 = arith.constant 0 : i32
    %c0_i32_0 = arith.constant 0 : i32
    %c0_i32_1 = arith.constant 0 : i32
    %c0_i32_2 = arith.constant 0 : i32
    return %c0_i32, %c0_i32_0, %c0_i32_1 : i32, i32, i32
  }
  func.func @transform_2(%arg0: i32) -> (i32, i32) {
    %c0_i32 = arith.constant 0 : i32
    %c0_i32_0 = arith.constant 0 : i32
    %c0_i32_1 = arith.constant 0 : i32
    return %c0_i32, %c0_i32_0 : i32, i32
  }
  func.func @transform_3(%arg0: i32) -> (i32, i32, i32) {
    %c0_i32 = arith.constant 0 : i32
    %c0_i32_0 = arith.constant 0 : i32
    %c0_i32_1 = arith.constant 0 : i32
    %c0_i32_2 = arith.constant 0 : i32
    return %c0_i32, %c0_i32_0, %c0_i32_1 : i32, i32, i32
  }
  func.func @transform_4(%arg0: i32) -> (i32, i32) {
    %c0_i32 = arith.constant 0 : i32
    %c0_i32_0 = arith.constant 0 : i32
    %c0_i32_1 = arith.constant 0 : i32
    return %c0_i32, %c0_i32_0 : i32, i32
  }
  func.func @transform_5(%arg0: i32) -> (i32, i32, i32) {
    %c0_i32 = arith.constant 0 : i32
    %c0_i32_0 = arith.constant 0 : i32
    %c0_i32_1 = arith.constant 0 : i32
    return %arg0, %c0_i32, %c0_i32_0 : i32, i32, i32
  }
}

</mosaic_0001>

<llo_original>
// kernel: simple_model_forward.1
$region0: #{simple_model_forward.1}
  #allocation0 [shape = 'u32[]', space=smem, size = 0x4, offset = 0x4, fixed_abs, tag = 'smem constant byte address 0x4 - core index']
  #allocation1 [shape = 'u32[72,128]{1,0:T(1,128)}', space=vmem, size = 0x9000, scoped, tag = 'internal scratch']
  %s0 = inlined_call_operand.hbm [shape: f32[2,16,16], index: 0, kind: input, shape index: {}]
  %s1 = inlined_call_operand.hbm [shape: f32[5,16,240], index: 1, kind: input, shape index: {}]
  %s2 = inlined_call_operand.hbm [shape: f32[1,240], index: 2, kind: input, shape index: {}]
  %s3 = inlined_call_operand.hbm [shape: f32[5,240,512], index: 3, kind: input, shape index: {}]
  %s4 = inlined_call_operand.hbm [shape: f32[1,512], index: 4, kind: input, shape index: {}]
  %s5 = inlined_call_operand.vmem [shape: f32[2,8,512], index: 5, kind: output, shape index: {}]
  %s6 = sld [smem:[#allocation0]]
  $region73: #{simple_model_forward.1} parent=0
    _
  %s8 = ssub.s32 1, %s6
  %s9 = scalar_select 0, %s8, %s6
  $region1: #{simple_model_forward.1} parent=0
    #allocation2 [shape = 'u8[16384]{0}', space=vmem, size = 0x4000, scoped, tag = 'input window, operand 0']
    #allocation3 [shape = 's32[2]{0}', space=sflag, size = 0x8, scoped, tag = 'scoped memory for simple_model_forward.1']
    #allocation4 [shape = 'u8[81920]{0}', space=vmem, size = 0x14000, scoped, tag = 'input window, operand 1, single buffered']
    #allocation5 [shape = 's32[1]{0}', space=sflag, size = 0x4, scoped, tag = 'scoped memory for simple_model_forward.1']
    #allocation6 [shape = 'u8[1024]{0}', space=vmem, size = 0x400, scoped, tag = 'input window, operand 2, single buffered']
    #allocation7 [shape = 'u8[2457600]{0}', space=vmem, size = 0x258000, scoped, tag = 'input window, operand 3, single buffered']
    #allocation8 [shape = 's32[1]{0}', space=sflag, size = 0x4, scoped, tag = 'scoped memory for simple_model_forward.1']
    #allocation9 [shape = 'u8[2048]{0}', space=vmem, size = 0x800, scoped, tag = 'input window, operand 4, single buffered']
    %10 = vsyncpa [#allocation3], 0
    %s11 = scalar_lea.sflag [#allocation3], 1
    %12 = vsyncpa %s11, 0
    %13 = vsyncpa [#allocation5], 0
    %14 = vsyncpa [#allocation8], 0
    loop: start=0, step=1, limit=4
    $region2: #{simple_model_forward.1} parent=1 // loop_pre_header
      _
    $region3: #{simple_model_forward.1} parent=1 // loop_header
      %s16 = sphi 0, %s20
      %p17 = scmp.ge.s32.totalorder %s16, 4
      %s26 = sphi 0, %s28
      %s29 = sphi 0, %s26
      %s30 = sphi 0, %s29
      %s46 = sphi 0, %s30
      %s50 = sphi 0, %s50
      %s52 = sphi 0, %s50
      %s53 = sphi 0, %s52
      %s67 = sphi 0, %s53
      %s71 = sphi 0, %s71
      %s73 = sphi 0, %s71
      %s74 = sphi 0, %s73
      %s88 = sphi 0, %s74
      %s92 = sphi 0, %s92
      %s94 = sphi 0, %s92
      %s95 = sphi 0, %s94
      %s109 = sphi 0, %s95
      %s113 = sphi 0, %s113
      %s115 = sphi 0, %s113
      %s116 = sphi 0, %s115
      %s130 = sphi 0, %s116
      %s136 = sphi 0, %s138
      %s139 = sphi 0, %s136
      %s140 = sphi 0, %s139
      %s156 = sphi 0, %s140
    $region4: #{simple_model_forward.1} parent=1 // loop_header_branch
      %19 = sbr.rel (%p17) target = $region8
    $region5: #{simple_model_forward.1} parent=1 // loop_body
      %s21 = ssub.s32 %s16, 1
      %s22 = ssub.s32 %s16, 2
      %s23 = sadd.s32 %s16, 1
      %s24 = ssub.s32 %s16, %s23
      %p25 = scmp.eq.s32.totalorder %s24, 0
      %s27 = sadd.s32 %s26, 1
      %s28 = scalar_select %p25, %s26, %s27
      %p31 = pneg %p25
      %p32 = scmp.eq.s32.totalorder %s16, 1
      %p33 = por %p31, %p32
      %p34 = scmp.ne.s32.totalorder %s26, %s29
      %p35 = scmp.eq.s32.totalorder %s16, 0
      %p36 = por %p34, %p35
      %p37 = scmp.ne.s32.totalorder %s26, %s29
      %p38 = scmp.eq.s32.totalorder %s21, 1
      %p39 = por %p37, %p38
      %p40 = scmp.ne.s32.totalorder %s29, %s30
      %p41 = scmp.eq.s32.totalorder %s21, 0
      %p42 = por %p40, %p41
      %p43 = scmp.ne.s32.totalorder %s29, %s30
      %p44 = scmp.eq.s32.totalorder %s22, 1
      %p45 = por %p43, %p44
      %p47 = scmp.ne.s32.totalorder %s30, %s46
      %p48 = scmp.eq.s32.totalorder %s22, 0
      %p49 = por %p47, %p48
      %s51 = sadd.s32 %s50, 1
      %p54 = scmp.eq.s32.totalorder %s16, 1
      %p55 = scmp.ne.s32.totalorder %s50, %s52
      %p56 = scmp.eq.s32.totalorder %s16, 0
      %p57 = por %p55, %p56
      %p58 = scmp.ne.s32.totalorder %s50, %s52
      %p59 = scmp.eq.s32.totalorder %s21, 1
      %p60 = por %p58, %p59
      %p61 = scmp.ne.s32.totalorder %s52, %s53
      %p62 = scmp.eq.s32.totalorder %s21, 0
      %p63 = por %p61, %p62
      %p64 = scmp.ne.s32.totalorder %s52, %s53
      %p65 = scmp.eq.s32.totalorder %s22, 1
      %p66 = por %p64, %p65
      %p68 = scmp.ne.s32.totalorder %s53, %s67
      %p69 = scmp.eq.s32.totalorder %s22, 0
      %p70 = por %p68, %p69
      %s72 = sadd.s32 %s71, 1
      %p75 = scmp.eq.s32.totalorder %s16, 1
      %p76 = scmp.ne.s32.totalorder %s71, %s73
      %p77 = scmp.eq.s32.totalorder %s16, 0
      %p78 = por %p76, %p77
      %p79 = scmp.ne.s32.totalorder %s71, %s73
      %p80 = scmp.eq.s32.totalorder %s21, 1
      %p81 = por %p79, %p80
      %p82 = scmp.ne.s32.totalorder %s73, %s74
      %p83 = scmp.eq.s32.totalorder %s21, 0
      %p84 = por %p82, %p83
      %p85 = scmp.ne.s32.totalorder %s73, %s74
      %p86 = scmp.eq.s32.totalorder %s22, 1
      %p87 = por %p85, %p86
      %p89 = scmp.ne.s32.totalorder %s74, %s88
      %p90 = scmp.eq.s32.totalorder %s22, 0
      %p91 = por %p89, %p90
      %s93 = sadd.s32 %s92, 1
      %p96 = scmp.eq.s32.totalorder %s16, 1
      %p97 = scmp.ne.s32.totalorder %s92, %s94
      %p98 = scmp.eq.s32.totalorder %s16, 0
      %p99 = por %p97, %p98
      %p100 = scmp.ne.s32.totalorder %s92, %s94
      %p101 = scmp.eq.s32.totalorder %s21, 1
      %p102 = por %p100, %p101
      %p103 = scmp.ne.s32.totalorder %s94, %s95
      %p104 = scmp.eq.s32.totalorder %s21, 0
      %p105 = por %p103, %p104
      %p106 = scmp.ne.s32.totalorder %s94, %s95
      %p107 = scmp.eq.s32.totalorder %s22, 1
      %p108 = por %p106, %p107
      %p110 = scmp.ne.s32.totalorder %s95, %s109
      %p111 = scmp.eq.s32.totalorder %s22, 0
      %p112 = por %p110, %p111
      %s114 = sadd.s32 %s113, 1
      %p117 = scmp.eq.s32.totalorder %s16, 1
      %p118 = scmp.ne.s32.totalorder %s113, %s115
      %p119 = scmp.eq.s32.totalorder %s16, 0
      %p120 = por %p118, %p119
      %p121 = scmp.ne.s32.totalorder %s113, %s115
      %p122 = scmp.eq.s32.totalorder %s21, 1
      %p123 = por %p121, %p122
      %p124 = scmp.ne.s32.totalorder %s115, %s116
      %p125 = scmp.eq.s32.totalorder %s21, 0
      %p126 = por %p124, %p125
      %p127 = scmp.ne.s32.totalorder %s115, %s116
      %p128 = scmp.eq.s32.totalorder %s22, 1
      %p129 = por %p127, %p128
      %p131 = scmp.ne.s32.totalorder %s116, %s130
      %p132 = scmp.eq.s32.totalorder %s22, 0
      %p133 = por %p131, %p132
      %s134 = ssub.s32 %s16, %s23
      %p135 = scmp.eq.s32.totalorder %s134, 0
      %s137 = sadd.s32 %s136, 1
      %s138 = scalar_select %p135, %s136, %s137
      %p141 = pneg %p135
      %p142 = scmp.eq.s32.totalorder %s16, 1
      %p143 = por %p141, %p142
      %p144 = scmp.ne.s32.totalorder %s136, %s139
      %p145 = scmp.eq.s32.totalorder %s16, 0
      %p146 = por %p144, %p145
      %p147 = scmp.ne.s32.totalorder %s136, %s139
      %p148 = scmp.eq.s32.totalorder %s21, 1
      %p149 = por %p147, %p148
      %p150 = scmp.ne.s32.totalorder %s139, %s140
      %p151 = scmp.eq.s32.totalorder %s21, 0
      %p152 = por %p150, %p151
      %p153 = scmp.ne.s32.totalorder %s139, %s140
      %p154 = scmp.eq.s32.totalorder %s22, 1
      %p155 = por %p153, %p154
      %p157 = scmp.ne.s32.totalorder %s140, %s156
      %p158 = scmp.eq.s32.totalorder %s22, 0
      %p159 = por %p157, %p158
      %p160 = scmp.le.s32.totalorder 1, %s16
      %p161 = scmp.lt.s32.totalorder %s16, 3
      %p162 = pnand %p160, %p161
      %p163 = pneg %p162
      // Predicated region
      $region9: #{simple_model_forward.1} parent=5 // pred_check
        _
      $region10: #{simple_model_forward.1} parent=5 // pred_check_branch
        %165 = sbr.rel (%p162) target = $region12
      $region11: #{simple_model_forward.1} parent=5 // pred_region
        %s166 = ssub.s32 %s16, 1
        // Predicated region
        $region13: #{simple_model_forward.1} parent=11 // pred_check
          %p167 = pneg %p63
        $region14: #{simple_model_forward.1} parent=11 // pred_check_branch
          %169 = sbr.rel (%p167) target = $region16
        $region15: #{simple_model_forward.1} parent=11 // pred_region
          %171 = vsyncadd [#allocation5], 0
          %s172 = sshll.u32 %s1, 4
          %s173 = int_to_ptr.hbm [resolvable:$true] %s172
          %s174 = sshll.u32 [#allocation4], 4
          %s175 = int_to_ptr.vmem [resolvable:$true] %s174
          %180 = dma.hbm_to_vmem [thread:$0]  %s173, 2560, %s175, [#allocation5], 256, 256, 16
        $region16: #{simple_model_forward.1} parent=11 // pred_fallthru
          _
        // Predicated region
        $region17: #{simple_model_forward.1} parent=11 // pred_check
          %p181 = pneg %p84
        $region18: #{simple_model_forward.1} parent=11 // pred_check_branch
          %183 = sbr.rel (%p181) target = $region20
        $region19: #{simple_model_forward.1} parent=11 // pred_region
          %185 = vsyncadd [#allocation5], 0
          %s187 = sshll.u32 %s2, 4
          %s188 = int_to_ptr.hbm [resolvable:$true] %s187
          %s189 = sshll.u32 [#allocation6], 4
          %s190 = int_to_ptr.vmem [resolvable:$true] %s189
          %192 = dma.hbm_to_vmem [thread:$0]  %s188, 32, %s190, [#allocation5]
        $region20: #{simple_model_forward.1} parent=11 // pred_fallthru
          _
        // Predicated region
        $region21: #{simple_model_forward.1} parent=11 // pred_check
          %p193 = pneg %p105
        $region22: #{simple_model_forward.1} parent=11 // pred_check_branch
          %195 = sbr.rel (%p193) target = $region24
        $region23: #{simple_model_forward.1} parent=11 // pred_region
          %197 = vsyncadd [#allocation8], 0
          %s198 = sshll.u32 %s3, 4
          %s199 = int_to_ptr.hbm [resolvable:$true] %s198
          %s200 = sshll.u32 [#allocation7], 4
          %s201 = int_to_ptr.vmem [resolvable:$true] %s200
          %206 = dma.hbm_to_vmem [thread:$0]  %s199, 76800, %s201, [#allocation8], 512, 512, 32
        $region24: #{simple_model_forward.1} parent=11 // pred_fallthru
          _
        // Predicated region
        $region25: #{simple_model_forward.1} parent=11 // pred_check
          %p207 = pneg %p126
        $region26: #{simple_model_forward.1} parent=11 // pred_check_branch
          %209 = sbr.rel (%p207) target = $region28
        $region27: #{simple_model_forward.1} parent=11 // pred_region
          %211 = vsyncadd [#allocation8], 0
          %s213 = sshll.u32 %s4, 4
          %s214 = int_to_ptr.hbm [resolvable:$true] %s213
          %s215 = sshll.u32 [#allocation9], 4
          %s216 = int_to_ptr.vmem [resolvable:$true] %s215
          %218 = dma.hbm_to_vmem [thread:$0]  %s214, 64, %s216, [#allocation8]
        $region28: #{simple_model_forward.1} parent=11 // pred_fallthru
          _
      $region12: #{simple_model_forward.1} parent=5 // pred_fallthru
        _
      %p219 = scmp.lt.s32.totalorder %s16, 2
      // Predicated region
      $region29: #{simple_model_forward.1} parent=5 // pred_check
        %p220 = pneg %p219
      $region30: #{simple_model_forward.1} parent=5 // pred_check_branch
        %222 = sbr.rel (%p220) target = $region32
      $region31: #{simple_model_forward.1} parent=5 // pred_region
        // Predicated region
        $region33: #{simple_model_forward.1} parent=31 // pred_check
          %p223 = pneg %p36
        $region34: #{simple_model_forward.1} parent=31 // pred_check_branch
          %225 = sbr.rel (%p223) target = $region36
        $region35: #{simple_model_forward.1} parent=31 // pred_region
          %s226 = sand.u32 %s26, 1
          %s227 = scalar_lea.sflag [#allocation3], %s226
          %s228 = sand.u32 %s26, 1
          %s229 = smul.addr %s228, 16
          %s230 = scalar_lea.vmem [#allocation2], %s229
          %232 = vsyncadd %s227, 0
          %s233 = smul.addr %s16, 2
          %s234 = smul.addr %s233, 8
          %s235 = scalar_lea.hbm %s0, %s234
          %s236 = sshll.u32 %s235, 4
          %s237 = int_to_ptr.hbm [resolvable:$true] %s236
          %s238 = sshll.u32 %s230, 4
          %s239 = int_to_ptr.vmem [resolvable:$true] %s238
          %244 = dma.hbm_to_vmem [thread:$0]  %s237, 256, %s239, %s227, 128, 128, 8
        $region36: #{simple_model_forward.1} parent=31 // pred_fallthru
          _
      $region32: #{simple_model_forward.1} parent=5 // pred_fallthru
        _
      %p245 = scmp.le.s32.totalorder 1, %s16
      %p246 = scmp.lt.s32.totalorder %s16, 3
      %p247 = pnand %p245, %p246
      %p248 = pneg %p247
      // Predicated region
      $region37: #{simple_model_forward.1} parent=5 // pred_check
        _
      $region38: #{simple_model_forward.1} parent=5 // pred_check_branch
        %250 = sbr.rel (%p247) target = $region40
      $region39: #{simple_model_forward.1} parent=5 // pred_region
        %s251 = ssub.s32 %s16, 1
        %s252 = sand.u32 %s29, 1
        %s253 = scalar_lea.sflag [#allocation3], %s252
        %s254 = sand.u32 %s29, 1
        %s255 = smul.addr %s254, 16
        %s256 = scalar_lea.vmem [#allocation2], %s255
        // Predicated region
        $region41: #{simple_model_forward.1} parent=39 // pred_check
          %p257 = pneg %p42
        $region42: #{simple_model_forward.1} parent=39 // pred_check_branch
          %259 = sbr.rel (%p257) target = $region44
        $region43: #{simple_model_forward.1} parent=39 // pred_region
          %261 = dma.done %s253, 256
        $region44: #{simple_model_forward.1} parent=39 // pred_fallthru
          _
        // Predicated region
        $region45: #{simple_model_forward.1} parent=39 // pred_check
          %p262 = pneg %p63
        $region46: #{simple_model_forward.1} parent=39 // pred_check_branch
          %264 = sbr.rel (%p262) target = $region48
        $region47: #{simple_model_forward.1} parent=39 // pred_region
          %266 = dma.done [#allocation5], 2560
        $region48: #{simple_model_forward.1} parent=39 // pred_fallthru
          _
        // Predicated region
        $region49: #{simple_model_forward.1} parent=39 // pred_check
          %p267 = pneg %p84
        $region50: #{simple_model_forward.1} parent=39 // pred_check_branch
          %269 = sbr.rel (%p267) target = $region52
        $region51: #{simple_model_forward.1} parent=39 // pred_region
          %271 = dma.done [#allocation5], 32
        $region52: #{simple_model_forward.1} parent=39 // pred_fallthru
          _
        // Predicated region
        $region53: #{simple_model_forward.1} parent=39 // pred_check
          %p272 = pneg %p105
        $region54: #{simple_model_forward.1} parent=39 // pred_check_branch
          %274 = sbr.rel (%p272) target = $region56
        $region55: #{simple_model_forward.1} parent=39 // pred_region
          %276 = dma.done [#allocation8], 76800
        $region56: #{simple_model_forward.1} parent=39 // pred_fallthru
          _
        // Predicated region
        $region57: #{simple_model_forward.1} parent=39 // pred_check
          %p277 = pneg %p126
        $region58: #{simple_model_forward.1} parent=39 // pred_check_branch
          %279 = sbr.rel (%p277) target = $region60
        $region59: #{simple_model_forward.1} parent=39 // pred_region
          %281 = dma.done [#allocation8], 64
        $region60: #{simple_model_forward.1} parent=39 // pred_fallthru
          _
        %s282 = sand.u32 %s29, 1
        %s283 = scalar_lea.sflag [#allocation3], %s282
        %s284 = sand.u32 %s29, 1
        %s285 = smul.addr %s284, 16
        %s286 = scalar_lea.vmem [#allocation2], %s285
        %p287 = pneg %p42
        %p288 = pneg %p39
        %p289 = pneg %p63
        %p290 = pneg %p60
        %p291 = pneg %p84
        %p292 = pneg %p81
        %p293 = pneg %p105
        %p294 = pneg %p102
        %p295 = pneg %p126
        %p296 = pneg %p123
        %p297 = pneg %p152
        %p298 = pneg %p149
        %p299 = scmp.lt.s32.totalorder %s21, 1
        %s300 = scalar_select %p299, %s21, 1
        %s301 = smul.addr %s300, 4
        %s302 = smul.addr %s301, 8
        %s303 = scalar_lea.vmem %s5, %s302
        %p304 = scmp.lt.s32.totalorder %s21, 1
        %s305 = scalar_select %p304, %s21, 1
        %s306 = smul.addr %s305, 4
        %s307 = smul.addr %s306, 8
        %s308 = scalar_lea.vmem %s5, %s307
        %v309 = vld [vmem:[%s256] sm:$0xff]
        %v310 = vld [vmem:[%s256 + $0x8] sm:$0xff]
        %v311 = vld [vmem:[#allocation6] sm:$0x3]
        %v313 = vperm.slane %v311, 0
        %v314 = vperm.slane %v311, 1
        %v317 = vld [vmem:[#allocation4] sm:$0xff]
        %v318 = vld [vmem:[#allocation4 + $0x8] sm:$0xff]
        %v319 = vld [vmem:[#allocation4 + $0x10] sm:$0xff]
        %v320 = vld [vmem:[#allocation4 + $0x18] sm:$0xff]
        %vm321 = vcmask 130048
        %v323 = vsel %vm321, %v309, 0
        %v326 = vsel %vm321, %v310, 0
        %328 = vmatpush.msra.mxu0 0.0
        %329 = vmatpush.msra.mxu0 0.0
        %330 = vmatpush.msra.mxu0 0.0
        %331 = vmatpush.msra.mxu0 0.0
        %332 = vmatpush.msra.mxu0 0.0
        %333 = vmatpush.msra.mxu0 0.0
        %334 = vmatpush.msra.mxu0 0.0
        %335 = vmatpush.msra.mxu0 0.0
        %336 = vmatpush.msra.mxu0 0.0
        %337 = vmatpush.msra.mxu0 0.0
        %338 = vmatpush.msra.mxu0 0.0
        %339 = vmatpush.msra.mxu0 0.0
        %340 = vmatpush.msra.mxu0 0.0
        %341 = vmatpush.msra.mxu0 0.0
        %342 = vmatpush.msra.mxu0 %v319
        %343 = vmatpush.msra.mxu0 %v317
        %344 = vmatmul.f32.gmra.mxu0 %v323
        %v345 = vpop.f32.mrf.mxu0
        %v346 = vadd.f32 0.0, %v345
        %347 = vmatmul.f32.gmra.mxu0 %v326
        %v348 = vpop.f32.mrf.mxu0
        %v349 = vadd.f32 0.0, %v348
        %350 = vdwg.mxu0
        %351 = vmatpush.msra.mxu0 0.0
        %352 = vmatpush.msra.mxu0 0.0
        %353 = vmatpush.msra.mxu0 0.0
        %354 = vmatpush.msra.mxu0 0.0
        %355 = vmatpush.msra.mxu0 0.0
        %356 = vmatpush.msra.mxu0 0.0
        %357 = vmatpush.msra.mxu0 0.0
        %358 = vmatpush.msra.mxu0 0.0
        %359 = vmatpush.msra.mxu0 0.0
        %360 = vmatpush.msra.mxu0 0.0
        %361 = vmatpush.msra.mxu0 0.0
        %362 = vmatpush.msra.mxu0 0.0
        %363 = vmatpush.msra.mxu0 0.0
        %364 = vmatpush.msra.mxu0 0.0
        %365 = vmatpush.msra.mxu0 %v320
        %366 = vmatpush.msra.mxu0 %v318
        %367 = vmatmul.f32.gmra.mxu0 %v323
        %v368 = vpop.f32.mrf.mxu0
        %v369 = vadd.f32 0.0, %v368
        %370 = vmatmul.f32.gmra.mxu0 %v326
        %v371 = vpop.f32.mrf.mxu0
        %v372 = vadd.f32 0.0, %v371
        %373 = vdwg.mxu0
        %v374 = vadd.f32 %v313, %v346
        %v375 = vadd.f32 %v314, %v369
        %v376 = vadd.f32 %v313, %v349
        %v377 = vadd.f32 %v314, %v372
        %s378 = scalar_lea.vmem [#allocation4], 32
        %v379 = vld [vmem:[%s378] sm:$0xff]
        %v380 = vld [vmem:[%s378 + $0x8] sm:$0xff]
        %v381 = vld [vmem:[%s378 + $0x10] sm:$0xff]
        %v382 = vld [vmem:[%s378 + $0x18] sm:$0xff]
        %vm383 = vcmask 1046528
        %v384 = vrot.slane %v309, 1
        %v385 = vrot.slane %v310, 1
        %v386 = vsel %vm383, %v384, %v385
        %v387 = vsel %vm321, %v386, 0
        %v389 = vsel %vm321, %v385, 0
        %391 = vmatpush.msra.mxu0 0.0
        %392 = vmatpush.msra.mxu0 0.0
        %393 = vmatpush.msra.mxu0 0.0
        %394 = vmatpush.msra.mxu0 0.0
        %395 = vmatpush.msra.mxu0 0.0
        %396 = vmatpush.msra.mxu0 0.0
        %397 = vmatpush.msra.mxu0 0.0
        %398 = vmatpush.msra.mxu0 0.0
        %399 = vmatpush.msra.mxu0 0.0
        %400 = vmatpush.msra.mxu0 0.0
        %401 = vmatpush.msra.mxu0 0.0
        %402 = vmatpush.msra.mxu0 0.0
        %403 = vmatpush.msra.mxu0 0.0
        %404 = vmatpush.msra.mxu0 0.0
        %405 = vmatpush.msra.mxu0 %v381
        %406 = vmatpush.msra.mxu0 %v379
        %407 = vmatmul.f32.gmra.mxu0 %v387
        %v408 = vpop.f32.mrf.mxu0
        %v409 = vadd.f32 0.0, %v408
        %410 = vmatmul.f32.gmra.mxu0 %v389
        %v411 = vpop.f32.mrf.mxu0
        %v412 = vadd.f32 0.0, %v411
        %413 = vdwg.mxu0
        %414 = vmatpush.msra.mxu0 0.0
        %415 = vmatpush.msra.mxu0 0.0
        %416 = vmatpush.msra.mxu0 0.0
        %417 = vmatpush.msra.mxu0 0.0
        %418 = vmatpush.msra.mxu0 0.0
        %419 = vmatpush.msra.mxu0 0.0
        %420 = vmatpush.msra.mxu0 0.0
        %421 = vmatpush.msra.mxu0 0.0
        %422 = vmatpush.msra.mxu0 0.0
        %423 = vmatpush.msra.mxu0 0.0
        %424 = vmatpush.msra.mxu0 0.0
        %425 = vmatpush.msra.mxu0 0.0
        %426 = vmatpush.msra.mxu0 0.0
        %427 = vmatpush.msra.mxu0 0.0
        %428 = vmatpush.msra.mxu0 %v382
        %429 = vmatpush.msra.mxu0 %v380
        %430 = vmatmul.f32.gmra.mxu0 %v387
        %v431 = vpop.f32.mrf.mxu0
        %v432 = vadd.f32 0.0, %v431
        %433 = vmatmul.f32.gmra.mxu0 %v389
        %v434 = vpop.f32.mrf.mxu0
        %v435 = vadd.f32 0.0, %v434
        %436 = vdwg.mxu0
        %v437 = vadd.f32 %v374, %v409
        %v438 = vadd.f32 %v375, %v432
        %v439 = vadd.f32 %v376, %v412
        %v440 = vadd.f32 %v377, %v435
        %s441 = scalar_lea.vmem [#allocation4], 64
        %v442 = vld [vmem:[%s441] sm:$0xff]
        %v443 = vld [vmem:[%s441 + $0x8] sm:$0xff]
        %v444 = vld [vmem:[%s441 + $0x10] sm:$0xff]
        %v445 = vld [vmem:[%s441 + $0x18] sm:$0xff]
        %vm446 = vcmask 1045504
        %v447 = vrot.slane %v309, 2
        %v448 = vrot.slane %v310, 2
        %v449 = vsel %vm446, %v447, %v448
        %v450 = vsel %vm321, %v449, 0
        %v452 = vsel %vm321, %v448, 0
        %454 = vmatpush.msra.mxu0 0.0
        %455 = vmatpush.msra.mxu0 0.0
        %456 = vmatpush.msra.mxu0 0.0
        %457 = vmatpush.msra.mxu0 0.0
        %458 = vmatpush.msra.mxu0 0.0
        %459 = vmatpush.msra.mxu0 0.0
        %460 = vmatpush.msra.mxu0 0.0
        %461 = vmatpush.msra.mxu0 0.0
        %462 = vmatpush.msra.mxu0 0.0
        %463 = vmatpush.msra.mxu0 0.0
        %464 = vmatpush.msra.mxu0 0.0
        %465 = vmatpush.msra.mxu0 0.0
        %466 = vmatpush.msra.mxu0 0.0
        %467 = vmatpush.msra.mxu0 0.0
        %468 = vmatpush.msra.mxu0 %v444
        %469 = vmatpush.msra.mxu0 %v442
        %470 = vmatmul.f32.gmra.mxu0 %v450
        %v471 = vpop.f32.mrf.mxu0
        %v472 = vadd.f32 0.0, %v471
        %473 = vmatmul.f32.gmra.mxu0 %v452
        %v474 = vpop.f32.mrf.mxu0
        %v475 = vadd.f32 0.0, %v474
        %476 = vdwg.mxu0
        %477 = vmatpush.msra.mxu0 0.0
        %478 = vmatpush.msra.mxu0 0.0
        %479 = vmatpush.msra.mxu0 0.0
        %480 = vmatpush.msra.mxu0 0.0
        %481 = vmatpush.msra.mxu0 0.0
        %482 = vmatpush.msra.mxu0 0.0
        %483 = vmatpush.msra.mxu0 0.0
        %484 = vmatpush.msra.mxu0 0.0
        %485 = vmatpush.msra.mxu0 0.0
        %486 = vmatpush.msra.mxu0 0.0
        %487 = vmatpush.msra.mxu0 0.0
        %488 = vmatpush.msra.mxu0 0.0
        %489 = vmatpush.msra.mxu0 0.0
        %490 = vmatpush.msra.mxu0 0.0
        %491 = vmatpush.msra.mxu0 %v445
        %492 = vmatpush.msra.mxu0 %v443
        %493 = vmatmul.f32.gmra.mxu0 %v450
        %v494 = vpop.f32.mrf.mxu0
        %v495 = vadd.f32 0.0, %v494
        %496 = vmatmul.f32.gmra.mxu0 %v452
        %v497 = vpop.f32.mrf.mxu0
        %v498 = vadd.f32 0.0, %v497
        %499 = vdwg.mxu0
        %v500 = vadd.f32 %v437, %v472
        %v501 = vadd.f32 %v438, %v495
        %v502 = vadd.f32 %v439, %v475
        %v503 = vadd.f32 %v440, %v498
        %s504 = scalar_lea.vmem [#allocation4], 96
        %v505 = vld [vmem:[%s504] sm:$0xff]
        %v506 = vld [vmem:[%s504 + $0x8] sm:$0xff]
        %v507 = vld [vmem:[%s504 + $0x10] sm:$0xff]
        %v508 = vld [vmem:[%s504 + $0x18] sm:$0xff]
        %vm509 = vcmask 1044480
        %v510 = vrot.slane %v309, 3
        %v511 = vrot.slane %v310, 3
        %v512 = vsel %vm509, %v510, %v511
        %v513 = vsel %vm321, %v512, 0
        %v515 = vsel %vm321, %v511, 0
        %517 = vmatpush.msra.mxu0 0.0
        %518 = vmatpush.msra.mxu0 0.0
        %519 = vmatpush.msra.mxu0 0.0
        %520 = vmatpush.msra.mxu0 0.0
        %521 = vmatpush.msra.mxu0 0.0
        %522 = vmatpush.msra.mxu0 0.0
        %523 = vmatpush.msra.mxu0 0.0
        %524 = vmatpush.msra.mxu0 0.0
        %525 = vmatpush.msra.mxu0 0.0
        %526 = vmatpush.msra.mxu0 0.0
        %527 = vmatpush.msra.mxu0 0.0
        %528 = vmatpush.msra.mxu0 0.0
        %529 = vmatpush.msra.mxu0 0.0
        %530 = vmatpush.msra.mxu0 0.0
        %531 = vmatpush.msra.mxu0 %v507
        %532 = vmatpush.msra.mxu0 %v505
        %533 = vmatmul.f32.gmra.mxu0 %v513
        %v534 = vpop.f32.mrf.mxu0
        %v535 = vadd.f32 0.0, %v534
        %536 = vmatmul.f32.gmra.mxu0 %v515
        %v537 = vpop.f32.mrf.mxu0
        %v538 = vadd.f32 0.0, %v537
        %539 = vdwg.mxu0
        %540 = vmatpush.msra.mxu0 0.0
        %541 = vmatpush.msra.mxu0 0.0
        %542 = vmatpush.msra.mxu0 0.0
        %543 = vmatpush.msra.mxu0 0.0
        %544 = vmatpush.msra.mxu0 0.0
        %545 = vmatpush.msra.mxu0 0.0
        %546 = vmatpush.msra.mxu0 0.0
        %547 = vmatpush.msra.mxu0 0.0
        %548 = vmatpush.msra.mxu0 0.0
        %549 = vmatpush.msra.mxu0 0.0
        %550 = vmatpush.msra.mxu0 0.0
        %551 = vmatpush.msra.mxu0 0.0
        %552 = vmatpush.msra.mxu0 0.0
        %553 = vmatpush.msra.mxu0 0.0
        %554 = vmatpush.msra.mxu0 %v508
        %555 = vmatpush.msra.mxu0 %v506
        %556 = vmatmul.f32.gmra.mxu0 %v513
        %v557 = vpop.f32.mrf.mxu0
        %v558 = vadd.f32 0.0, %v557
        %559 = vmatmul.f32.gmra.mxu0 %v515
        %v560 = vpop.f32.mrf.mxu0
        %v561 = vadd.f32 0.0, %v560
        %562 = vdwg.mxu0
        %v563 = vadd.f32 %v500, %v535
        %v564 = vadd.f32 %v501, %v558
        %v565 = vadd.f32 %v502, %v538
        %v566 = vadd.f32 %v503, %v561
        %s567 = scalar_lea.vmem [#allocation4], 128
        %v568 = vld [vmem:[%s567] sm:$0xff]
        %v569 = vld [vmem:[%s567 + $0x8] sm:$0xff]
        %v570 = vld [vmem:[%s567 + $0x10] sm:$0xff]
        %v571 = vld [vmem:[%s567 + $0x18] sm:$0xff]
        %vm572 = vcmask 1043456
        %v573 = vrot.slane %v309, 4
        %v574 = vrot.slane %v310, 4
        %v575 = vsel %vm572, %v573, %v574
        %v576 = vsel %vm321, %v575, 0
        %v578 = vsel %vm321, %v574, 0
        %580 = vmatpush.msra.mxu0 0.0
        %581 = vmatpush.msra.mxu0 0.0
        %582 = vmatpush.msra.mxu0 0.0
        %583 = vmatpush.msra.mxu0 0.0
        %584 = vmatpush.msra.mxu0 0.0
        %585 = vmatpush.msra.mxu0 0.0
        %586 = vmatpush.msra.mxu0 0.0
        %587 = vmatpush.msra.mxu0 0.0
        %588 = vmatpush.msra.mxu0 0.0
        %589 = vmatpush.msra.mxu0 0.0
        %590 = vmatpush.msra.mxu0 0.0
        %591 = vmatpush.msra.mxu0 0.0
        %592 = vmatpush.msra.mxu0 0.0
        %593 = vmatpush.msra.mxu0 0.0
        %594 = vmatpush.msra.mxu0 %v570
        %595 = vmatpush.msra.mxu0 %v568
        %596 = vmatmul.f32.gmra.mxu0 %v576
        %v597 = vpop.f32.mrf.mxu0
        %v598 = vadd.f32 0.0, %v597
        %599 = vmatmul.f32.gmra.mxu0 %v578
        %v600 = vpop.f32.mrf.mxu0
        %v601 = vadd.f32 0.0, %v600
        %602 = vdwg.mxu0
        %603 = vmatpush.msra.mxu0 0.0
        %604 = vmatpush.msra.mxu0 0.0
        %605 = vmatpush.msra.mxu0 0.0
        %606 = vmatpush.msra.mxu0 0.0
        %607 = vmatpush.msra.mxu0 0.0
        %608 = vmatpush.msra.mxu0 0.0
        %609 = vmatpush.msra.mxu0 0.0
        %610 = vmatpush.msra.mxu0 0.0
        %611 = vmatpush.msra.mxu0 0.0
        %612 = vmatpush.msra.mxu0 0.0
        %613 = vmatpush.msra.mxu0 0.0
        %614 = vmatpush.msra.mxu0 0.0
        %615 = vmatpush.msra.mxu0 0.0
        %616 = vmatpush.msra.mxu0 0.0
        %617 = vmatpush.msra.mxu0 %v571
        %618 = vmatpush.msra.mxu0 %v569
        %619 = vmatmul.f32.gmra.mxu0 %v576
        %v620 = vpop.f32.mrf.mxu0
        %v621 = vadd.f32 0.0, %v620
        %622 = vmatmul.f32.gmra.mxu0 %v578
        %v623 = vpop.f32.mrf.mxu0
        %v624 = vadd.f32 0.0, %v623
        %625 = vdwg.mxu0
        %v626 = vadd.f32 %v563, %v598
        %v627 = vadd.f32 %v564, %v621
        %v628 = vadd.f32 %v565, %v601
        %v629 = vadd.f32 %v566, %v624
        %v630 = vmax.f32 %v626, 0.0
        %v631 = vmax.f32 %v627, 0.0
        %v632 = vmax.f32 %v628, 0.0
        %v633 = vmax.f32 %v629, 0.0
        %v634 = vld [vmem:[#allocation9] sm:$0xf]
        %v636 = vperm.slane %v634, 0
        %v637 = vperm.slane %v634, 1
        %v638 = vperm.slane %v634, 2
        %v639 = vperm.slane %v634, 3
        %v644 = vld [vmem:[#allocation7] sm:$0xff]
        %v645 = vld [vmem:[#allocation7 + $0x8] sm:$0xff]
        %v646 = vld [vmem:[#allocation7 + $0x10] sm:$0xff]
        %v647 = vld [vmem:[#allocation7 + $0x18] sm:$0xff]
        %v648 = vld [vmem:[#allocation7 + $0x20] sm:$0xff]
        %v649 = vld [vmem:[#allocation7 + $0x28] sm:$0xff]
        %v650 = vld [vmem:[#allocation7 + $0x30] sm:$0xff]
        %v651 = vld [vmem:[#allocation7 + $0x38] sm:$0xff]
        %v652 = vld [vmem:[#allocation7 + $0x40] sm:$0xff]
        %v653 = vld [vmem:[#allocation7 + $0x48] sm:$0xff]
        %v654 = vld [vmem:[#allocation7 + $0x50] sm:$0xff]
        %v655 = vld [vmem:[#allocation7 + $0x58] sm:$0xff]
        %v656 = vld [vmem:[#allocation7 + $0x60] sm:$0xff]
        %v657 = vld [vmem:[#allocation7 + $0x68] sm:$0xff]
        %v658 = vld [vmem:[#allocation7 + $0x70] sm:$0xff]
        %v659 = vld [vmem:[#allocation7 + $0x78] sm:$0xff]
        %v660 = vld [vmem:[#allocation7 + $0x80] sm:$0xff]
        %v661 = vld [vmem:[#allocation7 + $0x88] sm:$0xff]
        %v662 = vld [vmem:[#allocation7 + $0x90] sm:$0xff]
        %v663 = vld [vmem:[#allocation7 + $0x98] sm:$0xff]
        %v664 = vld [vmem:[#allocation7 + $0xa0] sm:$0xff]
        %v665 = vld [vmem:[#allocation7 + $0xa8] sm:$0xff]
        %v666 = vld [vmem:[#allocation7 + $0xb0] sm:$0xff]
        %v667 = vld [vmem:[#allocation7 + $0xb8] sm:$0xff]
        %v668 = vld [vmem:[#allocation7 + $0xc0] sm:$0xff]
        %v669 = vld [vmem:[#allocation7 + $0xc8] sm:$0xff]
        %v670 = vld [vmem:[#allocation7 + $0xd0] sm:$0xff]
        %v671 = vld [vmem:[#allocation7 + $0xd8] sm:$0xff]
        %v672 = vld [vmem:[#allocation7 + $0xe0] sm:$0xff]
        %v673 = vld [vmem:[#allocation7 + $0xe8] sm:$0xff]
        %v674 = vld [vmem:[#allocation7 + $0xf0] sm:$0xff]
        %v675 = vld [vmem:[#allocation7 + $0xf8] sm:$0xff]
        %v676 = vld [vmem:[#allocation7 + $0x100] sm:$0xff]
        %v677 = vld [vmem:[#allocation7 + $0x108] sm:$0xff]
        %v678 = vld [vmem:[#allocation7 + $0x110] sm:$0xff]
        %v679 = vld [vmem:[#allocation7 + $0x118] sm:$0xff]
        %v680 = vld [vmem:[#allocation7 + $0x120] sm:$0xff]
        %v681 = vld [vmem:[#allocation7 + $0x128] sm:$0xff]
        %v682 = vld [vmem:[#allocation7 + $0x130] sm:$0xff]
        %v683 = vld [vmem:[#allocation7 + $0x138] sm:$0xff]
        %v684 = vld [vmem:[#allocation7 + $0x140] sm:$0xff]
        %v685 = vld [vmem:[#allocation7 + $0x148] sm:$0xff]
        %v686 = vld [vmem:[#allocation7 + $0x150] sm:$0xff]
        %v687 = vld [vmem:[#allocation7 + $0x158] sm:$0xff]
        %v688 = vld [vmem:[#allocation7 + $0x160] sm:$0xff]
        %v689 = vld [vmem:[#allocation7 + $0x168] sm:$0xff]
        %v690 = vld [vmem:[#allocation7 + $0x170] sm:$0xff]
        %v691 = vld [vmem:[#allocation7 + $0x178] sm:$0xff]
        %v692 = vld [vmem:[#allocation7 + $0x180] sm:$0xff]
        %v693 = vld [vmem:[#allocation7 + $0x188] sm:$0xff]
        %v694 = vld [vmem:[#allocation7 + $0x190] sm:$0xff]
        %v695 = vld [vmem:[#allocation7 + $0x198] sm:$0xff]
        %v696 = vld [vmem:[#allocation7 + $0x1a0] sm:$0xff]
        %v697 = vld [vmem:[#allocation7 + $0x1a8] sm:$0xff]
        %v698 = vld [vmem:[#allocation7 + $0x1b0] sm:$0xff]
        %v699 = vld [vmem:[#allocation7 + $0x1b8] sm:$0xff]
        %v700 = vld [vmem:[#allocation7 + $0x1c0] sm:$0xff]
        %v701 = vld [vmem:[#allocation7 + $0x1c8] sm:$0xff]
        %v702 = vld [vmem:[#allocation7 + $0x1d0] sm:$0xff]
        %v703 = vld [vmem:[#allocation7 + $0x1d8] sm:$0xff]
        %v704 = vld [vmem:[#allocation7 + $0x1e0] sm:$0xff]
        %v705 = vld [vmem:[#allocation7 + $0x1e8] sm:$0xff]
        %v706 = vld [vmem:[#allocation7 + $0x1f0] sm:$0xff]
        %v707 = vld [vmem:[#allocation7 + $0x1f8] sm:$0xff]
        %v708 = vld [vmem:[#allocation7 + $0x200] sm:$0xff]
        %v709 = vld [vmem:[#allocation7 + $0x208] sm:$0xff]
        %v710 = vld [vmem:[#allocation7 + $0x210] sm:$0xff]
        %v711 = vld [vmem:[#allocation7 + $0x218] sm:$0xff]
        %v712 = vld [vmem:[#allocation7 + $0x220] sm:$0xff]
        %v713 = vld [vmem:[#allocation7 + $0x228] sm:$0xff]
        %v714 = vld [vmem:[#allocation7 + $0x230] sm:$0xff]
        %v715 = vld [vmem:[#allocation7 + $0x238] sm:$0xff]
        %v716 = vld [vmem:[#allocation7 + $0x240] sm:$0xff]
        %v717 = vld [vmem:[#allocation7 + $0x248] sm:$0xff]
        %v718 = vld [vmem:[#allocation7 + $0x250] sm:$0xff]
        %v719 = vld [vmem:[#allocation7 + $0x258] sm:$0xff]
        %v720 = vld [vmem:[#allocation7 + $0x260] sm:$0xff]
        %v721 = vld [vmem:[#allocation7 + $0x268] sm:$0xff]
        %v722 = vld [vmem:[#allocation7 + $0x270] sm:$0xff]
        %v723 = vld [vmem:[#allocation7 + $0x278] sm:$0xff]
        %v724 = vld [vmem:[#allocation7 + $0x280] sm:$0xff]
        %v725 = vld [vmem:[#allocation7 + $0x288] sm:$0xff]
        %v726 = vld [vmem:[#allocation7 + $0x290] sm:$0xff]
        %v727 = vld [vmem:[#allocation7 + $0x298] sm:$0xff]
        %v728 = vld [vmem:[#allocation7 + $0x2a0] sm:$0xff]
        %v729 = vld [vmem:[#allocation7 + $0x2a8] sm:$0xff]
        %v730 = vld [vmem:[#allocation7 + $0x2b0] sm:$0xff]
        %v731 = vld [vmem:[#allocation7 + $0x2b8] sm:$0xff]
        %v732 = vld [vmem:[#allocation7 + $0x2c0] sm:$0xff]
        %v733 = vld [vmem:[#allocation7 + $0x2c8] sm:$0xff]
        %v734 = vld [vmem:[#allocation7 + $0x2d0] sm:$0xff]
        %v735 = vld [vmem:[#allocation7 + $0x2d8] sm:$0xff]
        %v736 = vld [vmem:[#allocation7 + $0x2e0] sm:$0xff]
        %v737 = vld [vmem:[#allocation7 + $0x2e8] sm:$0xff]
        %v738 = vld [vmem:[#allocation7 + $0x2f0] sm:$0xff]
        %v739 = vld [vmem:[#allocation7 + $0x2f8] sm:$0xff]
        %v740 = vld [vmem:[#allocation7 + $0x300] sm:$0xff]
        %v741 = vld [vmem:[#allocation7 + $0x308] sm:$0xff]
        %v742 = vld [vmem:[#allocation7 + $0x310] sm:$0xff]
        %v743 = vld [vmem:[#allocation7 + $0x318] sm:$0xff]
        %v744 = vld [vmem:[#allocation7 + $0x320] sm:$0xff]
        %v745 = vld [vmem:[#allocation7 + $0x328] sm:$0xff]
        %v746 = vld [vmem:[#allocation7 + $0x330] sm:$0xff]
        %v747 = vld [vmem:[#allocation7 + $0x338] sm:$0xff]
        %v748 = vld [vmem:[#allocation7 + $0x340] sm:$0xff]
        %v749 = vld [vmem:[#allocation7 + $0x348] sm:$0xff]
        %v750 = vld [vmem:[#allocation7 + $0x350] sm:$0xff]
        %v751 = vld [vmem:[#allocation7 + $0x358] sm:$0xff]
        %v752 = vld [vmem:[#allocation7 + $0x360] sm:$0xff]
        %v753 = vld [vmem:[#allocation7 + $0x368] sm:$0xff]
        %v754 = vld [vmem:[#allocation7 + $0x370] sm:$0xff]
        %v755 = vld [vmem:[#allocation7 + $0x378] sm:$0xff]
        %v756 = vld [vmem:[#allocation7 + $0x380] sm:$0xff]
        %v757 = vld [vmem:[#allocation7 + $0x388] sm:$0xff]
        %v758 = vld [vmem:[#allocation7 + $0x390] sm:$0xff]
        %v759 = vld [vmem:[#allocation7 + $0x398] sm:$0xff]
        %v760 = vld [vmem:[#allocation7 + $0x3a0] sm:$0xff]
        %v761 = vld [vmem:[#allocation7 + $0x3a8] sm:$0xff]
        %v762 = vld [vmem:[#allocation7 + $0x3b0] sm:$0xff]
        %v763 = vld [vmem:[#allocation7 + $0x3b8] sm:$0xff]
        %vm764 = vcmask 916480
        %v766 = vsel %vm764, %v631, 0
        %768 = vmatpush.msra.mxu0 %v704
        %769 = vmatpush.msra.mxu0 %v700
        %770 = vmatpush.msra.mxu0 %v696
        %771 = vmatpush.msra.mxu0 %v692
        %772 = vmatpush.msra.mxu0 %v688
        %773 = vmatpush.msra.mxu0 %v684
        %774 = vmatpush.msra.mxu0 %v680
        %775 = vmatpush.msra.mxu0 %v676
        %776 = vmatpush.msra.mxu0 %v672
        %777 = vmatpush.msra.mxu0 %v668
        %778 = vmatpush.msra.mxu0 %v664
        %779 = vmatpush.msra.mxu0 %v660
        %780 = vmatpush.msra.mxu0 %v656
        %781 = vmatpush.msra.mxu0 %v652
        %782 = vmatpush.msra.mxu0 %v648
        %783 = vmatpush.msra.mxu0 %v644
        %784 = vmatmul.f32.gmra.mxu0 %v630
        %v785 = vpop.f32.mrf.mxu0
        %v786 = vadd.f32 0.0, %v785
        %787 = vdwg.mxu0
        %788 = vmatpush.msra.mxu0 0.0
        %789 = vmatpush.msra.mxu0 0.0
        %790 = vmatpush.msra.mxu0 %v760
        %791 = vmatpush.msra.mxu0 %v756
        %792 = vmatpush.msra.mxu0 %v752
        %793 = vmatpush.msra.mxu0 %v748
        %794 = vmatpush.msra.mxu0 %v744
        %795 = vmatpush.msra.mxu0 %v740
        %796 = vmatpush.msra.mxu0 %v736
        %797 = vmatpush.msra.mxu0 %v732
        %798 = vmatpush.msra.mxu0 %v728
        %799 = vmatpush.msra.mxu0 %v724
        %800 = vmatpush.msra.mxu0 %v720
        %801 = vmatpush.msra.mxu0 %v716
        %802 = vmatpush.msra.mxu0 %v712
        %803 = vmatpush.msra.mxu0 %v708
        %804 = vmatmul.f32.gmra.mxu0 %v766
        %v805 = vpop.f32.mrf.mxu0
        %v806 = vadd.f32 %v786, %v805
        %807 = vdwg.mxu0
        %808 = vmatpush.msra.mxu0 %v705
        %809 = vmatpush.msra.mxu0 %v701
        %810 = vmatpush.msra.mxu0 %v697
        %811 = vmatpush.msra.mxu0 %v693
        %812 = vmatpush.msra.mxu0 %v689
        %813 = vmatpush.msra.mxu0 %v685
        %814 = vmatpush.msra.mxu0 %v681
        %815 = vmatpush.msra.mxu0 %v677
        %816 = vmatpush.msra.mxu0 %v673
        %817 = vmatpush.msra.mxu0 %v669
        %818 = vmatpush.msra.mxu0 %v665
        %819 = vmatpush.msra.mxu0 %v661
        %820 = vmatpush.msra.mxu0 %v657
        %821 = vmatpush.msra.mxu0 %v653
        %822 = vmatpush.msra.mxu0 %v649
        %823 = vmatpush.msra.mxu0 %v645
        %824 = vmatmul.f32.gmra.mxu0 %v630
        %v825 = vpop.f32.mrf.mxu0
        %v826 = vadd.f32 0.0, %v825
        %827 = vdwg.mxu0
        %828 = vmatpush.msra.mxu0 0.0
        %829 = vmatpush.msra.mxu0 0.0
        %830 = vmatpush.msra.mxu0 %v761
        %831 = vmatpush.msra.mxu0 %v757
        %832 = vmatpush.msra.mxu0 %v753
        %833 = vmatpush.msra.mxu0 %v749
        %834 = vmatpush.msra.mxu0 %v745
        %835 = vmatpush.msra.mxu0 %v741
        %836 = vmatpush.msra.mxu0 %v737
        %837 = vmatpush.msra.mxu0 %v733
        %838 = vmatpush.msra.mxu0 %v729
        %839 = vmatpush.msra.mxu0 %v725
        %840 = vmatpush.msra.mxu0 %v721
        %841 = vmatpush.msra.mxu0 %v717
        %842 = vmatpush.msra.mxu0 %v713
        %843 = vmatpush.msra.mxu0 %v709
        %844 = vmatmul.f32.gmra.mxu0 %v766
        %v845 = vpop.f32.mrf.mxu0
        %v846 = vadd.f32 %v826, %v845
        %847 = vdwg.mxu0
        %848 = vmatpush.msra.mxu0 %v706
        %849 = vmatpush.msra.mxu0 %v702
        %850 = vmatpush.msra.mxu0 %v698
        %851 = vmatpush.msra.mxu0 %v694
        %852 = vmatpush.msra.mxu0 %v690
        %853 = vmatpush.msra.mxu0 %v686
        %854 = vmatpush.msra.mxu0 %v682
        %855 = vmatpush.msra.mxu0 %v678
        %856 = vmatpush.msra.mxu0 %v674
        %857 = vmatpush.msra.mxu0 %v670
        %858 = vmatpush.msra.mxu0 %v666
        %859 = vmatpush.msra.mxu0 %v662
        %860 = vmatpush.msra.mxu0 %v658
        %861 = vmatpush.msra.mxu0 %v654
        %862 = vmatpush.msra.mxu0 %v650
        %863 = vmatpush.msra.mxu0 %v646
        %864 = vmatmul.f32.gmra.mxu0 %v630
        %v865 = vpop.f32.mrf.mxu0
        %v866 = vadd.f32 0.0, %v865
        %867 = vdwg.mxu0
        %868 = vmatpush.msra.mxu0 0.0
        %869 = vmatpush.msra.mxu0 0.0
        %870 = vmatpush.msra.mxu0 %v762
        %871 = vmatpush.msra.mxu0 %v758
        %872 = vmatpush.msra.mxu0 %v754
        %873 = vmatpush.msra.mxu0 %v750
        %874 = vmatpush.msra.mxu0 %v746
        %875 = vmatpush.msra.mxu0 %v742
        %876 = vmatpush.msra.mxu0 %v738
        %877 = vmatpush.msra.mxu0 %v734
        %878 = vmatpush.msra.mxu0 %v730
        %879 = vmatpush.msra.mxu0 %v726
        %880 = vmatpush.msra.mxu0 %v722
        %881 = vmatpush.msra.mxu0 %v718
        %882 = vmatpush.msra.mxu0 %v714
        %883 = vmatpush.msra.mxu0 %v710
        %884 = vmatmul.f32.gmra.mxu0 %v766
        %v885 = vpop.f32.mrf.mxu0
        %v886 = vadd.f32 %v866, %v885
        %887 = vdwg.mxu0
        %888 = vmatpush.msra.mxu0 %v707
        %889 = vmatpush.msra.mxu0 %v703
        %890 = vmatpush.msra.mxu0 %v699
        %891 = vmatpush.msra.mxu0 %v695
        %892 = vmatpush.msra.mxu0 %v691
        %893 = vmatpush.msra.mxu0 %v687
        %894 = vmatpush.msra.mxu0 %v683
        %895 = vmatpush.msra.mxu0 %v679
        %896 = vmatpush.msra.mxu0 %v675
        %897 = vmatpush.msra.mxu0 %v671
        %898 = vmatpush.msra.mxu0 %v667
        %899 = vmatpush.msra.mxu0 %v663
        %900 = vmatpush.msra.mxu0 %v659
        %901 = vmatpush.msra.mxu0 %v655
        %902 = vmatpush.msra.mxu0 %v651
        %903 = vmatpush.msra.mxu0 %v647
        %904 = vmatmul.f32.gmra.mxu0 %v630
        %v905 = vpop.f32.mrf.mxu0
        %v906 = vadd.f32 0.0, %v905
        %907 = vdwg.mxu0
        %908 = vmatpush.msra.mxu0 0.0
        %909 = vmatpush.msra.mxu0 0.0
        %910 = vmatpush.msra.mxu0 %v763
        %911 = vmatpush.msra.mxu0 %v759
        %912 = vmatpush.msra.mxu0 %v755
        %913 = vmatpush.msra.mxu0 %v751
        %914 = vmatpush.msra.mxu0 %v747
        %915 = vmatpush.msra.mxu0 %v743
        %916 = vmatpush.msra.mxu0 %v739
        %917 = vmatpush.msra.mxu0 %v735
        %918 = vmatpush.msra.mxu0 %v731
        %919 = vmatpush.msra.mxu0 %v727
        %920 = vmatpush.msra.mxu0 %v723
        %921 = vmatpush.msra.mxu0 %v719
        %922 = vmatpush.msra.mxu0 %v715
        %923 = vmatpush.msra.mxu0 %v711
        %924 = vmatmul.f32.gmra.mxu0 %v766
        %v925 = vpop.f32.mrf.mxu0
        %v926 = vadd.f32 %v906, %v925
        %927 = vdwg.mxu0
        %v928 = vadd.f32 %v636, %v806
        %v929 = vadd.f32 %v637, %v846
        %v930 = vadd.f32 %v638, %v886
        %v931 = vadd.f32 %v639, %v926
        %s932 = scalar_lea.vmem [#allocation7], 960
        %v933 = vld [vmem:[%s932] sm:$0xff]
        %v934 = vld [vmem:[%s932 + $0x8] sm:$0xff]
        %v935 = vld [vmem:[%s932 + $0x10] sm:$0xff]
        %v936 = vld [vmem:[%s932 + $0x18] sm:$0xff]
        %v937 = vld [vmem:[%s932 + $0x20] sm:$0xff]
        %v938 = vld [vmem:[%s932 + $0x28] sm:$0xff]
        %v939 = vld [vmem:[%s932 + $0x30] sm:$0xff]
        %v940 = vld [vmem:[%s932 + $0x38] sm:$0xff]
        %v941 = vld [vmem:[%s932 + $0x40] sm:$0xff]
        %v942 = vld [vmem:[%s932 + $0x48] sm:$0xff]
        %v943 = vld [vmem:[%s932 + $0x50] sm:$0xff]
        %v944 = vld [vmem:[%s932 + $0x58] sm:$0xff]
        %v945 = vld [vmem:[%s932 + $0x60] sm:$0xff]
        %v946 = vld [vmem:[%s932 + $0x68] sm:$0xff]
        %v947 = vld [vmem:[%s932 + $0x70] sm:$0xff]
        %v948 = vld [vmem:[%s932 + $0x78] sm:$0xff]
        %v949 = vld [vmem:[%s932 + $0x80] sm:$0xff]
        %v950 = vld [vmem:[%s932 + $0x88] sm:$0xff]
        %v951 = vld [vmem:[%s932 + $0x90] sm:$0xff]
        %v952 = vld [vmem:[%s932 + $0x98] sm:$0xff]
        %v953 = vld [vmem:[%s932 + $0xa0] sm:$0xff]
        %v954 = vld [vmem:[%s932 + $0xa8] sm:$0xff]
        %v955 = vld [vmem:[%s932 + $0xb0] sm:$0xff]
        %v956 = vld [vmem:[%s932 + $0xb8] sm:$0xff]
        %v957 = vld [vmem:[%s932 + $0xc0] sm:$0xff]
        %v958 = vld [vmem:[%s932 + $0xc8] sm:$0xff]
        %v959 = vld [vmem:[%s932 + $0xd0] sm:$0xff]
        %v960 = vld [vmem:[%s932 + $0xd8] sm:$0xff]
        %v961 = vld [vmem:[%s932 + $0xe0] sm:$0xff]
        %v962 = vld [vmem:[%s932 + $0xe8] sm:$0xff]
        %v963 = vld [vmem:[%s932 + $0xf0] sm:$0xff]
        %v964 = vld [vmem:[%s932 + $0xf8] sm:$0xff]
        %v965 = vld [vmem:[%s932 + $0x100] sm:$0xff]
        %v966 = vld [vmem:[%s932 + $0x108] sm:$0xff]
        %v967 = vld [vmem:[%s932 + $0x110] sm:$0xff]
        %v968 = vld [vmem:[%s932 + $0x118] sm:$0xff]
        %v969 = vld [vmem:[%s932 + $0x120] sm:$0xff]
        %v970 = vld [vmem:[%s932 + $0x128] sm:$0xff]
        %v971 = vld [vmem:[%s932 + $0x130] sm:$0xff]
        %v972 = vld [vmem:[%s932 + $0x138] sm:$0xff]
        %v973 = vld [vmem:[%s932 + $0x140] sm:$0xff]
        %v974 = vld [vmem:[%s932 + $0x148] sm:$0xff]
        %v975 = vld [vmem:[%s932 + $0x150] sm:$0xff]
        %v976 = vld [vmem:[%s932 + $0x158] sm:$0xff]
        %v977 = vld [vmem:[%s932 + $0x160] sm:$0xff]
        %v978 = vld [vmem:[%s932 + $0x168] sm:$0xff]
        %v979 = vld [vmem:[%s932 + $0x170] sm:$0xff]
        %v980 = vld [vmem:[%s932 + $0x178] sm:$0xff]
        %v981 = vld [vmem:[%s932 + $0x180] sm:$0xff]
        %v982 = vld [vmem:[%s932 + $0x188] sm:$0xff]
        %v983 = vld [vmem:[%s932 + $0x190] sm:$0xff]
        %v984 = vld [vmem:[%s932 + $0x198] sm:$0xff]
        %v985 = vld [vmem:[%s932 + $0x1a0] sm:$0xff]
        %v986 = vld [vmem:[%s932 + $0x1a8] sm:$0xff]
        %v987 = vld [vmem:[%s932 + $0x1b0] sm:$0xff]
        %v988 = vld [vmem:[%s932 + $0x1b8] sm:$0xff]
        %v989 = vld [vmem:[%s932 + $0x1c0] sm:$0xff]
        %v990 = vld [vmem:[%s932 + $0x1c8] sm:$0xff]
        %v991 = vld [vmem:[%s932 + $0x1d0] sm:$0xff]
        %v992 = vld [vmem:[%s932 + $0x1d8] sm:$0xff]
        %v993 = vld [vmem:[%s932 + $0x1e0] sm:$0xff]
        %v994 = vld [vmem:[%s932 + $0x1e8] sm:$0xff]
        %v995 = vld [vmem:[%s932 + $0x1f0] sm:$0xff]
        %v996 = vld [vmem:[%s932 + $0x1f8] sm:$0xff]
        %v997 = vld [vmem:[%s932 + $0x200] sm:$0xff]
        %v998 = vld [vmem:[%s932 + $0x208] sm:$0xff]
        %v999 = vld [vmem:[%s932 + $0x210] sm:$0xff]
        %v1000 = vld [vmem:[%s932 + $0x218] sm:$0xff]
        %v1001 = vld [vmem:[%s932 + $0x220] sm:$0xff]
        %v1002 = vld [vmem:[%s932 + $0x228] sm:$0xff]
        %v1003 = vld [vmem:[%s932 + $0x230] sm:$0xff]
        %v1004 = vld [vmem:[%s932 + $0x238] sm:$0xff]
        %v1005 = vld [vmem:[%s932 + $0x240] sm:$0xff]
        %v1006 = vld [vmem:[%s932 + $0x248] sm:$0xff]
        %v1007 = vld [vmem:[%s932 + $0x250] sm:$0xff]
        %v1008 = vld [vmem:[%s932 + $0x258] sm:$0xff]
        %v1009 = vld [vmem:[%s932 + $0x260] sm:$0xff]
        %v1010 = vld [vmem:[%s932 + $0x268] sm:$0xff]
        %v1011 = vld [vmem:[%s932 + $0x270] sm:$0xff]
        %v1012 = vld [vmem:[%s932 + $0x278] sm:$0xff]
        %v1013 = vld [vmem:[%s932 + $0x280] sm:$0xff]
        %v1014 = vld [vmem:[%s932 + $0x288] sm:$0xff]
        %v1015 = vld [vmem:[%s932 + $0x290] sm:$0xff]
        %v1016 = vld [vmem:[%s932 + $0x298] sm:$0xff]
        %v1017 = vld [vmem:[%s932 + $0x2a0] sm:$0xff]
        %v1018 = vld [vmem:[%s932 + $0x2a8] sm:$0xff]
        %v1019 = vld [vmem:[%s932 + $0x2b0] sm:$0xff]
        %v1020 = vld [vmem:[%s932 + $0x2b8] sm:$0xff]
        %v1021 = vld [vmem:[%s932 + $0x2c0] sm:$0xff]
        %v1022 = vld [vmem:[%s932 + $0x2c8] sm:$0xff]
        %v1023 = vld [vmem:[%s932 + $0x2d0] sm:$0xff]
        %v1024 = vld [vmem:[%s932 + $0x2d8] sm:$0xff]
        %v1025 = vld [vmem:[%s932 + $0x2e0] sm:$0xff]
        %v1026 = vld [vmem:[%s932 + $0x2e8] sm:$0xff]
        %v1027 = vld [vmem:[%s932 + $0x2f0] sm:$0xff]
        %v1028 = vld [vmem:[%s932 + $0x2f8] sm:$0xff]
        %v1029 = vld [vmem:[%s932 + $0x300] sm:$0xff]
        %v1030 = vld [vmem:[%s932 + $0x308] sm:$0xff]
        %v1031 = vld [vmem:[%s932 + $0x310] sm:$0xff]
        %v1032 = vld [vmem:[%s932 + $0x318] sm:$0xff]
        %v1033 = vld [vmem:[%s932 + $0x320] sm:$0xff]
        %v1034 = vld [vmem:[%s932 + $0x328] sm:$0xff]
        %v1035 = vld [vmem:[%s932 + $0x330] sm:$0xff]
        %v1036 = vld [vmem:[%s932 + $0x338] sm:$0xff]
        %v1037 = vld [vmem:[%s932 + $0x340] sm:$0xff]
        %v1038 = vld [vmem:[%s932 + $0x348] sm:$0xff]
        %v1039 = vld [vmem:[%s932 + $0x350] sm:$0xff]
        %v1040 = vld [vmem:[%s932 + $0x358] sm:$0xff]
        %v1041 = vld [vmem:[%s932 + $0x360] sm:$0xff]
        %v1042 = vld [vmem:[%s932 + $0x368] sm:$0xff]
        %v1043 = vld [vmem:[%s932 + $0x370] sm:$0xff]
        %v1044 = vld [vmem:[%s932 + $0x378] sm:$0xff]
        %v1045 = vld [vmem:[%s932 + $0x380] sm:$0xff]
        %v1046 = vld [vmem:[%s932 + $0x388] sm:$0xff]
        %v1047 = vld [vmem:[%s932 + $0x390] sm:$0xff]
        %v1048 = vld [vmem:[%s932 + $0x398] sm:$0xff]
        %v1049 = vld [vmem:[%s932 + $0x3a0] sm:$0xff]
        %v1050 = vld [vmem:[%s932 + $0x3a8] sm:$0xff]
        %v1051 = vld [vmem:[%s932 + $0x3b0] sm:$0xff]
        %v1052 = vld [vmem:[%s932 + $0x3b8] sm:$0xff]
        %v1056 = vrot.slane %v630, 1
        %v1057 = vrot.slane %v632, 1
        %v1058 = vsel %vm383, %v1056, %v1057
        %v1059 = vrot.slane %v631, 1
        %v1060 = vrot.slane %v633, 1
        %v1061 = vsel %vm383, %v1059, %v1060
        %v1063 = vsel %vm764, %v1061, 0
        %1065 = vmatpush.msra.mxu0 %v993
        %1066 = vmatpush.msra.mxu0 %v989
        %1067 = vmatpush.msra.mxu0 %v985
        %1068 = vmatpush.msra.mxu0 %v981
        %1069 = vmatpush.msra.mxu0 %v977
        %1070 = vmatpush.msra.mxu0 %v973
        %1071 = vmatpush.msra.mxu0 %v969
        %1072 = vmatpush.msra.mxu0 %v965
        %1073 = vmatpush.msra.mxu0 %v961
        %1074 = vmatpush.msra.mxu0 %v957
        %1075 = vmatpush.msra.mxu0 %v953
        %1076 = vmatpush.msra.mxu0 %v949
        %1077 = vmatpush.msra.mxu0 %v945
        %1078 = vmatpush.msra.mxu0 %v941
        %1079 = vmatpush.msra.mxu0 %v937
        %1080 = vmatpush.msra.mxu0 %v933
        %1081 = vmatmul.f32.gmra.mxu0 %v1058
        %v1082 = vpop.f32.mrf.mxu0
        %v1083 = vadd.f32 0.0, %v1082
        %1084 = vdwg.mxu0
        %1085 = vmatpush.msra.mxu0 0.0
        %1086 = vmatpush.msra.mxu0 0.0
        %1087 = vmatpush.msra.mxu0 %v1049
        %1088 = vmatpush.msra.mxu0 %v1045
        %1089 = vmatpush.msra.mxu0 %v1041
        %1090 = vmatpush.msra.mxu0 %v1037
        %1091 = vmatpush.msra.mxu0 %v1033
        %1092 = vmatpush.msra.mxu0 %v1029
        %1093 = vmatpush.msra.mxu0 %v1025
        %1094 = vmatpush.msra.mxu0 %v1021
        %1095 = vmatpush.msra.mxu0 %v1017
        %1096 = vmatpush.msra.mxu0 %v1013
        %1097 = vmatpush.msra.mxu0 %v1009
        %1098 = vmatpush.msra.mxu0 %v1005
        %1099 = vmatpush.msra.mxu0 %v1001
        %1100 = vmatpush.msra.mxu0 %v997
        %1101 = vmatmul.f32.gmra.mxu0 %v1063
        %v1102 = vpop.f32.mrf.mxu0
        %v1103 = vadd.f32 %v1083, %v1102
        %1104 = vdwg.mxu0
        %1105 = vmatpush.msra.mxu0 %v994
        %1106 = vmatpush.msra.mxu0 %v990
        %1107 = vmatpush.msra.mxu0 %v986
        %1108 = vmatpush.msra.mxu0 %v982
        %1109 = vmatpush.msra.mxu0 %v978
        %1110 = vmatpush.msra.mxu0 %v974
        %1111 = vmatpush.msra.mxu0 %v970
        %1112 = vmatpush.msra.mxu0 %v966
        %1113 = vmatpush.msra.mxu0 %v962
        %1114 = vmatpush.msra.mxu0 %v958
        %1115 = vmatpush.msra.mxu0 %v954
        %1116 = vmatpush.msra.mxu0 %v950
        %1117 = vmatpush.msra.mxu0 %v946
        %1118 = vmatpush.msra.mxu0 %v942
        %1119 = vmatpush.msra.mxu0 %v938
        %1120 = vmatpush.msra.mxu0 %v934
        %1121 = vmatmul.f32.gmra.mxu0 %v1058
        %v1122 = vpop.f32.mrf.mxu0
        %v1123 = vadd.f32 0.0, %v1122
        %1124 = vdwg.mxu0
        %1125 = vmatpush.msra.mxu0 0.0
        %1126 = vmatpush.msra.mxu0 0.0
        %1127 = vmatpush.msra.mxu0 %v1050
        %1128 = vmatpush.msra.mxu0 %v1046
        %1129 = vmatpush.msra.mxu0 %v1042
        %1130 = vmatpush.msra.mxu0 %v1038
        %1131 = vmatpush.msra.mxu0 %v1034
        %1132 = vmatpush.msra.mxu0 %v1030
        %1133 = vmatpush.msra.mxu0 %v1026
        %1134 = vmatpush.msra.mxu0 %v1022
        %1135 = vmatpush.msra.mxu0 %v1018
        %1136 = vmatpush.msra.mxu0 %v1014
        %1137 = vmatpush.msra.mxu0 %v1010
        %1138 = vmatpush.msra.mxu0 %v1006
        %1139 = vmatpush.msra.mxu0 %v1002
        %1140 = vmatpush.msra.mxu0 %v998
        %1141 = vmatmul.f32.gmra.mxu0 %v1063
        %v1142 = vpop.f32.mrf.mxu0
        %v1143 = vadd.f32 %v1123, %v1142
        %1144 = vdwg.mxu0
        %1145 = vmatpush.msra.mxu0 %v995
        %1146 = vmatpush.msra.mxu0 %v991
        %1147 = vmatpush.msra.mxu0 %v987
        %1148 = vmatpush.msra.mxu0 %v983
        %1149 = vmatpush.msra.mxu0 %v979
        %1150 = vmatpush.msra.mxu0 %v975
        %1151 = vmatpush.msra.mxu0 %v971
        %1152 = vmatpush.msra.mxu0 %v967
        %1153 = vmatpush.msra.mxu0 %v963
        %1154 = vmatpush.msra.mxu0 %v959
        %1155 = vmatpush.msra.mxu0 %v955
        %1156 = vmatpush.msra.mxu0 %v951
        %1157 = vmatpush.msra.mxu0 %v947
        %1158 = vmatpush.msra.mxu0 %v943
        %1159 = vmatpush.msra.mxu0 %v939
        %1160 = vmatpush.msra.mxu0 %v935
        %1161 = vmatmul.f32.gmra.mxu0 %v1058
        %v1162 = vpop.f32.mrf.mxu0
        %v1163 = vadd.f32 0.0, %v1162
        %1164 = vdwg.mxu0
        %1165 = vmatpush.msra.mxu0 0.0
        %1166 = vmatpush.msra.mxu0 0.0
        %1167 = vmatpush.msra.mxu0 %v1051
        %1168 = vmatpush.msra.mxu0 %v1047
        %1169 = vmatpush.msra.mxu0 %v1043
        %1170 = vmatpush.msra.mxu0 %v1039
        %1171 = vmatpush.msra.mxu0 %v1035
        %1172 = vmatpush.msra.mxu0 %v1031
        %1173 = vmatpush.msra.mxu0 %v1027
        %1174 = vmatpush.msra.mxu0 %v1023
        %1175 = vmatpush.msra.mxu0 %v1019
        %1176 = vmatpush.msra.mxu0 %v1015
        %1177 = vmatpush.msra.mxu0 %v1011
        %1178 = vmatpush.msra.mxu0 %v1007
        %1179 = vmatpush.msra.mxu0 %v1003
        %1180 = vmatpush.msra.mxu0 %v999
        %1181 = vmatmul.f32.gmra.mxu0 %v1063
        %v1182 = vpop.f32.mrf.mxu0
        %v1183 = vadd.f32 %v1163, %v1182
        %1184 = vdwg.mxu0
        %1185 = vmatpush.msra.mxu0 %v996
        %1186 = vmatpush.msra.mxu0 %v992
        %1187 = vmatpush.msra.mxu0 %v988
        %1188 = vmatpush.msra.mxu0 %v984
        %1189 = vmatpush.msra.mxu0 %v980
        %1190 = vmatpush.msra.mxu0 %v976
        %1191 = vmatpush.msra.mxu0 %v972
        %1192 = vmatpush.msra.mxu0 %v968
        %1193 = vmatpush.msra.mxu0 %v964
        %1194 = vmatpush.msra.mxu0 %v960
        %1195 = vmatpush.msra.mxu0 %v956
        %1196 = vmatpush.msra.mxu0 %v952
        %1197 = vmatpush.msra.mxu0 %v948
        %1198 = vmatpush.msra.mxu0 %v944
        %1199 = vmatpush.msra.mxu0 %v940
        %1200 = vmatpush.msra.mxu0 %v936
        %1201 = vmatmul.f32.gmra.mxu0 %v1058
        %v1202 = vpop.f32.mrf.mxu0
        %v1203 = vadd.f32 0.0, %v1202
        %1204 = vdwg.mxu0
        %1205 = vmatpush.msra.mxu0 0.0
        %1206 = vmatpush.msra.mxu0 0.0
        %1207 = vmatpush.msra.mxu0 %v1052
        %1208 = vmatpush.msra.mxu0 %v1048
        %1209 = vmatpush.msra.mxu0 %v1044
        %1210 = vmatpush.msra.mxu0 %v1040
        %1211 = vmatpush.msra.mxu0 %v1036
        %1212 = vmatpush.msra.mxu0 %v1032
        %1213 = vmatpush.msra.mxu0 %v1028
        %1214 = vmatpush.msra.mxu0 %v1024
        %1215 = vmatpush.msra.mxu0 %v1020
        %1216 = vmatpush.msra.mxu0 %v1016
        %1217 = vmatpush.msra.mxu0 %v1012
        %1218 = vmatpush.msra.mxu0 %v1008
        %1219 = vmatpush.msra.mxu0 %v1004
        %1220 = vmatpush.msra.mxu0 %v1000
        %1221 = vmatmul.f32.gmra.mxu0 %v1063
        %v1222 = vpop.f32.mrf.mxu0
        %v1223 = vadd.f32 %v1203, %v1222
        %1224 = vdwg.mxu0
        %v1225 = vadd.f32 %v928, %v1103
        %v1226 = vadd.f32 %v929, %v1143
        %v1227 = vadd.f32 %v930, %v1183
        %v1228 = vadd.f32 %v931, %v1223
        %s1229 = scalar_lea.vmem [#allocation7], 1920
        %v1230 = vld [vmem:[%s1229] sm:$0xff]
        %v1231 = vld [vmem:[%s1229 + $0x8] sm:$0xff]
        %v1232 = vld [vmem:[%s1229 + $0x10] sm:$0xff]
        %v1233 = vld [vmem:[%s1229 + $0x18] sm:$0xff]
        %v1234 = vld [vmem:[%s1229 + $0x20] sm:$0xff]
        %v1235 = vld [vmem:[%s1229 + $0x28] sm:$0xff]
        %v1236 = vld [vmem:[%s1229 + $0x30] sm:$0xff]
        %v1237 = vld [vmem:[%s1229 + $0x38] sm:$0xff]
        %v1238 = vld [vmem:[%s1229 + $0x40] sm:$0xff]
        %v1239 = vld [vmem:[%s1229 + $0x48] sm:$0xff]
        %v1240 = vld [vmem:[%s1229 + $0x50] sm:$0xff]
        %v1241 = vld [vmem:[%s1229 + $0x58] sm:$0xff]
        %v1242 = vld [vmem:[%s1229 + $0x60] sm:$0xff]
        %v1243 = vld [vmem:[%s1229 + $0x68] sm:$0xff]
        %v1244 = vld [vmem:[%s1229 + $0x70] sm:$0xff]
        %v1245 = vld [vmem:[%s1229 + $0x78] sm:$0xff]
        %v1246 = vld [vmem:[%s1229 + $0x80] sm:$0xff]
        %v1247 = vld [vmem:[%s1229 + $0x88] sm:$0xff]
        %v1248 = vld [vmem:[%s1229 + $0x90] sm:$0xff]
        %v1249 = vld [vmem:[%s1229 + $0x98] sm:$0xff]
        %v1250 = vld [vmem:[%s1229 + $0xa0] sm:$0xff]
        %v1251 = vld [vmem:[%s1229 + $0xa8] sm:$0xff]
        %v1252 = vld [vmem:[%s1229 + $0xb0] sm:$0xff]
        %v1253 = vld [vmem:[%s1229 + $0xb8] sm:$0xff]
        %v1254 = vld [vmem:[%s1229 + $0xc0] sm:$0xff]
        %v1255 = vld [vmem:[%s1229 + $0xc8] sm:$0xff]
        %v1256 = vld [vmem:[%s1229 + $0xd0] sm:$0xff]
        %v1257 = vld [vmem:[%s1229 + $0xd8] sm:$0xff]
        %v1258 = vld [vmem:[%s1229 + $0xe0] sm:$0xff]
        %v1259 = vld [vmem:[%s1229 + $0xe8] sm:$0xff]
        %v1260 = vld [vmem:[%s1229 + $0xf0] sm:$0xff]
        %v1261 = vld [vmem:[%s1229 + $0xf8] sm:$0xff]
        %v1262 = vld [vmem:[%s1229 + $0x100] sm:$0xff]
        %v1263 = vld [vmem:[%s1229 + $0x108] sm:$0xff]
        %v1264 = vld [vmem:[%s1229 + $0x110] sm:$0xff]
        %v1265 = vld [vmem:[%s1229 + $0x118] sm:$0xff]
        %v1266 = vld [vmem:[%s1229 + $0x120] sm:$0xff]
        %v1267 = vld [vmem:[%s1229 + $0x128] sm:$0xff]
        %v1268 = vld [vmem:[%s1229 + $0x130] sm:$0xff]
        %v1269 = vld [vmem:[%s1229 + $0x138] sm:$0xff]
        %v1270 = vld [vmem:[%s1229 + $0x140] sm:$0xff]
        %v1271 = vld [vmem:[%s1229 + $0x148] sm:$0xff]
        %v1272 = vld [vmem:[%s1229 + $0x150] sm:$0xff]
        %v1273 = vld [vmem:[%s1229 + $0x158] sm:$0xff]
        %v1274 = vld [vmem:[%s1229 + $0x160] sm:$0xff]
        %v1275 = vld [vmem:[%s1229 + $0x168] sm:$0xff]
        %v1276 = vld [vmem:[%s1229 + $0x170] sm:$0xff]
        %v1277 = vld [vmem:[%s1229 + $0x178] sm:$0xff]
        %v1278 = vld [vmem:[%s1229 + $0x180] sm:$0xff]
        %v1279 = vld [vmem:[%s1229 + $0x188] sm:$0xff]
        %v1280 = vld [vmem:[%s1229 + $0x190] sm:$0xff]
        %v1281 = vld [vmem:[%s1229 + $0x198] sm:$0xff]
        %v1282 = vld [vmem:[%s1229 + $0x1a0] sm:$0xff]
        %v1283 = vld [vmem:[%s1229 + $0x1a8] sm:$0xff]
        %v1284 = vld [vmem:[%s1229 + $0x1b0] sm:$0xff]
        %v1285 = vld [vmem:[%s1229 + $0x1b8] sm:$0xff]
        %v1286 = vld [vmem:[%s1229 + $0x1c0] sm:$0xff]
        %v1287 = vld [vmem:[%s1229 + $0x1c8] sm:$0xff]
        %v1288 = vld [vmem:[%s1229 + $0x1d0] sm:$0xff]
        %v1289 = vld [vmem:[%s1229 + $0x1d8] sm:$0xff]
        %v1290 = vld [vmem:[%s1229 + $0x1e0] sm:$0xff]
        %v1291 = vld [vmem:[%s1229 + $0x1e8] sm:$0xff]
        %v1292 = vld [vmem:[%s1229 + $0x1f0] sm:$0xff]
        %v1293 = vld [vmem:[%s1229 + $0x1f8] sm:$0xff]
        %v1294 = vld [vmem:[%s1229 + $0x200] sm:$0xff]
        %v1295 = vld [vmem:[%s1229 + $0x208] sm:$0xff]
        %v1296 = vld [vmem:[%s1229 + $0x210] sm:$0xff]
        %v1297 = vld [vmem:[%s1229 + $0x218] sm:$0xff]
        %v1298 = vld [vmem:[%s1229 + $0x220] sm:$0xff]
        %v1299 = vld [vmem:[%s1229 + $0x228] sm:$0xff]
        %v1300 = vld [vmem:[%s1229 + $0x230] sm:$0xff]
        %v1301 = vld [vmem:[%s1229 + $0x238] sm:$0xff]
        %v1302 = vld [vmem:[%s1229 + $0x240] sm:$0xff]
        %v1303 = vld [vmem:[%s1229 + $0x248] sm:$0xff]
        %v1304 = vld [vmem:[%s1229 + $0x250] sm:$0xff]
        %v1305 = vld [vmem:[%s1229 + $0x258] sm:$0xff]
        %v1306 = vld [vmem:[%s1229 + $0x260] sm:$0xff]
        %v1307 = vld [vmem:[%s1229 + $0x268] sm:$0xff]
        %v1308 = vld [vmem:[%s1229 + $0x270] sm:$0xff]
        %v1309 = vld [vmem:[%s1229 + $0x278] sm:$0xff]
        %v1310 = vld [vmem:[%s1229 + $0x280] sm:$0xff]
        %v1311 = vld [vmem:[%s1229 + $0x288] sm:$0xff]
        %v1312 = vld [vmem:[%s1229 + $0x290] sm:$0xff]
        %v1313 = vld [vmem:[%s1229 + $0x298] sm:$0xff]
        %v1314 = vld [vmem:[%s1229 + $0x2a0] sm:$0xff]
        %v1315 = vld [vmem:[%s1229 + $0x2a8] sm:$0xff]
        %v1316 = vld [vmem:[%s1229 + $0x2b0] sm:$0xff]
        %v1317 = vld [vmem:[%s1229 + $0x2b8] sm:$0xff]
        %v1318 = vld [vmem:[%s1229 + $0x2c0] sm:$0xff]
        %v1319 = vld [vmem:[%s1229 + $0x2c8] sm:$0xff]
        %v1320 = vld [vmem:[%s1229 + $0x2d0] sm:$0xff]
        %v1321 = vld [vmem:[%s1229 + $0x2d8] sm:$0xff]
        %v1322 = vld [vmem:[%s1229 + $0x2e0] sm:$0xff]
        %v1323 = vld [vmem:[%s1229 + $0x2e8] sm:$0xff]
        %v1324 = vld [vmem:[%s1229 + $0x2f0] sm:$0xff]
        %v1325 = vld [vmem:[%s1229 + $0x2f8] sm:$0xff]
        %v1326 = vld [vmem:[%s1229 + $0x300] sm:$0xff]
        %v1327 = vld [vmem:[%s1229 + $0x308] sm:$0xff]
        %v1328 = vld [vmem:[%s1229 + $0x310] sm:$0xff]
        %v1329 = vld [vmem:[%s1229 + $0x318] sm:$0xff]
        %v1330 = vld [vmem:[%s1229 + $0x320] sm:$0xff]
        %v1331 = vld [vmem:[%s1229 + $0x328] sm:$0xff]
        %v1332 = vld [vmem:[%s1229 + $0x330] sm:$0xff]
        %v1333 = vld [vmem:[%s1229 + $0x338] sm:$0xff]
        %v1334 = vld [vmem:[%s1229 + $0x340] sm:$0xff]
        %v1335 = vld [vmem:[%s1229 + $0x348] sm:$0xff]
        %v1336 = vld [vmem:[%s1229 + $0x350] sm:$0xff]
        %v1337 = vld [vmem:[%s1229 + $0x358] sm:$0xff]
        %v1338 = vld [vmem:[%s1229 + $0x360] sm:$0xff]
        %v1339 = vld [vmem:[%s1229 + $0x368] sm:$0xff]
        %v1340 = vld [vmem:[%s1229 + $0x370] sm:$0xff]
        %v1341 = vld [vmem:[%s1229 + $0x378] sm:$0xff]
        %v1342 = vld [vmem:[%s1229 + $0x380] sm:$0xff]
        %v1343 = vld [vmem:[%s1229 + $0x388] sm:$0xff]
        %v1344 = vld [vmem:[%s1229 + $0x390] sm:$0xff]
        %v1345 = vld [vmem:[%s1229 + $0x398] sm:$0xff]
        %v1346 = vld [vmem:[%s1229 + $0x3a0] sm:$0xff]
        %v1347 = vld [vmem:[%s1229 + $0x3a8] sm:$0xff]
        %v1348 = vld [vmem:[%s1229 + $0x3b0] sm:$0xff]
        %v1349 = vld [vmem:[%s1229 + $0x3b8] sm:$0xff]
        %v1350 = vrot.slane %v630, 2
        %v1351 = vrot.slane %v632, 2
        %v1352 = vsel %vm446, %v1350, %v1351
        %v1353 = vrot.slane %v631, 2
        %v1354 = vrot.slane %v633, 2
        %v1355 = vsel %vm446, %v1353, %v1354
        %v1357 = vsel %vm764, %v1355, 0
        %1359 = vmatpush.msra.mxu0 %v1290
        %1360 = vmatpush.msra.mxu0 %v1286
        %1361 = vmatpush.msra.mxu0 %v1282
        %1362 = vmatpush.msra.mxu0 %v1278
        %1363 = vmatpush.msra.mxu0 %v1274
        %1364 = vmatpush.msra.mxu0 %v1270
        %1365 = vmatpush.msra.mxu0 %v1266
        %1366 = vmatpush.msra.mxu0 %v1262
        %1367 = vmatpush.msra.mxu0 %v1258
        %1368 = vmatpush.msra.mxu0 %v1254
        %1369 = vmatpush.msra.mxu0 %v1250
        %1370 = vmatpush.msra.mxu0 %v1246
        %1371 = vmatpush.msra.mxu0 %v1242
        %1372 = vmatpush.msra.mxu0 %v1238
        %1373 = vmatpush.msra.mxu0 %v1234
        %1374 = vmatpush.msra.mxu0 %v1230
        %1375 = vmatmul.f32.gmra.mxu0 %v1352
        %v1376 = vpop.f32.mrf.mxu0
        %v1377 = vadd.f32 0.0, %v1376
        %1378 = vdwg.mxu0
        %1379 = vmatpush.msra.mxu0 0.0
        %1380 = vmatpush.msra.mxu0 0.0
        %1381 = vmatpush.msra.mxu0 %v1346
        %1382 = vmatpush.msra.mxu0 %v1342
        %1383 = vmatpush.msra.mxu0 %v1338
        %1384 = vmatpush.msra.mxu0 %v1334
        %1385 = vmatpush.msra.mxu0 %v1330
        %1386 = vmatpush.msra.mxu0 %v1326
        %1387 = vmatpush.msra.mxu0 %v1322
        %1388 = vmatpush.msra.mxu0 %v1318
        %1389 = vmatpush.msra.mxu0 %v1314
        %1390 = vmatpush.msra.mxu0 %v1310
        %1391 = vmatpush.msra.mxu0 %v1306
        %1392 = vmatpush.msra.mxu0 %v1302
        %1393 = vmatpush.msra.mxu0 %v1298
        %1394 = vmatpush.msra.mxu0 %v1294
        %1395 = vmatmul.f32.gmra.mxu0 %v1357
        %v1396 = vpop.f32.mrf.mxu0
        %v1397 = vadd.f32 %v1377, %v1396
        %1398 = vdwg.mxu0
        %1399 = vmatpush.msra.mxu0 %v1291
        %1400 = vmatpush.msra.mxu0 %v1287
        %1401 = vmatpush.msra.mxu0 %v1283
        %1402 = vmatpush.msra.mxu0 %v1279
        %1403 = vmatpush.msra.mxu0 %v1275
        %1404 = vmatpush.msra.mxu0 %v1271
        %1405 = vmatpush.msra.mxu0 %v1267
        %1406 = vmatpush.msra.mxu0 %v1263
        %1407 = vmatpush.msra.mxu0 %v1259
        %1408 = vmatpush.msra.mxu0 %v1255
        %1409 = vmatpush.msra.mxu0 %v1251
        %1410 = vmatpush.msra.mxu0 %v1247
        %1411 = vmatpush.msra.mxu0 %v1243
        %1412 = vmatpush.msra.mxu0 %v1239
        %1413 = vmatpush.msra.mxu0 %v1235
        %1414 = vmatpush.msra.mxu0 %v1231
        %1415 = vmatmul.f32.gmra.mxu0 %v1352
        %v1416 = vpop.f32.mrf.mxu0
        %v1417 = vadd.f32 0.0, %v1416
        %1418 = vdwg.mxu0
        %1419 = vmatpush.msra.mxu0 0.0
        %1420 = vmatpush.msra.mxu0 0.0
        %1421 = vmatpush.msra.mxu0 %v1347
        %1422 = vmatpush.msra.mxu0 %v1343
        %1423 = vmatpush.msra.mxu0 %v1339
        %1424 = vmatpush.msra.mxu0 %v1335
        %1425 = vmatpush.msra.mxu0 %v1331
        %1426 = vmatpush.msra.mxu0 %v1327
        %1427 = vmatpush.msra.mxu0 %v1323
        %1428 = vmatpush.msra.mxu0 %v1319
        %1429 = vmatpush.msra.mxu0 %v1315
        %1430 = vmatpush.msra.mxu0 %v1311
        %1431 = vmatpush.msra.mxu0 %v1307
        %1432 = vmatpush.msra.mxu0 %v1303
        %1433 = vmatpush.msra.mxu0 %v1299
        %1434 = vmatpush.msra.mxu0 %v1295
        %1435 = vmatmul.f32.gmra.mxu0 %v1357
        %v1436 = vpop.f32.mrf.mxu0
        %v1437 = vadd.f32 %v1417, %v1436
        %1438 = vdwg.mxu0
        %1439 = vmatpush.msra.mxu0 %v1292
        %1440 = vmatpush.msra.mxu0 %v1288
        %1441 = vmatpush.msra.mxu0 %v1284
        %1442 = vmatpush.msra.mxu0 %v1280
        %1443 = vmatpush.msra.mxu0 %v1276
        %1444 = vmatpush.msra.mxu0 %v1272
        %1445 = vmatpush.msra.mxu0 %v1268
        %1446 = vmatpush.msra.mxu0 %v1264
        %1447 = vmatpush.msra.mxu0 %v1260
        %1448 = vmatpush.msra.mxu0 %v1256
        %1449 = vmatpush.msra.mxu0 %v1252
        %1450 = vmatpush.msra.mxu0 %v1248
        %1451 = vmatpush.msra.mxu0 %v1244
        %1452 = vmatpush.msra.mxu0 %v1240
        %1453 = vmatpush.msra.mxu0 %v1236
        %1454 = vmatpush.msra.mxu0 %v1232
        %1455 = vmatmul.f32.gmra.mxu0 %v1352
        %v1456 = vpop.f32.mrf.mxu0
        %v1457 = vadd.f32 0.0, %v1456
        %1458 = vdwg.mxu0
        %1459 = vmatpush.msra.mxu0 0.0
        %1460 = vmatpush.msra.mxu0 0.0
        %1461 = vmatpush.msra.mxu0 %v1348
        %1462 = vmatpush.msra.mxu0 %v1344
        %1463 = vmatpush.msra.mxu0 %v1340
        %1464 = vmatpush.msra.mxu0 %v1336
        %1465 = vmatpush.msra.mxu0 %v1332
        %1466 = vmatpush.msra.mxu0 %v1328
        %1467 = vmatpush.msra.mxu0 %v1324
        %1468 = vmatpush.msra.mxu0 %v1320
        %1469 = vmatpush.msra.mxu0 %v1316
        %1470 = vmatpush.msra.mxu0 %v1312
        %1471 = vmatpush.msra.mxu0 %v1308
        %1472 = vmatpush.msra.mxu0 %v1304
        %1473 = vmatpush.msra.mxu0 %v1300
        %1474 = vmatpush.msra.mxu0 %v1296
        %1475 = vmatmul.f32.gmra.mxu0 %v1357
        %v1476 = vpop.f32.mrf.mxu0
        %v1477 = vadd.f32 %v1457, %v1476
        %1478 = vdwg.mxu0
        %1479 = vmatpush.msra.mxu0 %v1293
        %1480 = vmatpush.msra.mxu0 %v1289
        %1481 = vmatpush.msra.mxu0 %v1285
        %1482 = vmatpush.msra.mxu0 %v1281
        %1483 = vmatpush.msra.mxu0 %v1277
        %1484 = vmatpush.msra.mxu0 %v1273
        %1485 = vmatpush.msra.mxu0 %v1269
        %1486 = vmatpush.msra.mxu0 %v1265
        %1487 = vmatpush.msra.mxu0 %v1261
        %1488 = vmatpush.msra.mxu0 %v1257
        %1489 = vmatpush.msra.mxu0 %v1253
        %1490 = vmatpush.msra.mxu0 %v1249
        %1491 = vmatpush.msra.mxu0 %v1245
        %1492 = vmatpush.msra.mxu0 %v1241
        %1493 = vmatpush.msra.mxu0 %v1237
        %1494 = vmatpush.msra.mxu0 %v1233
        %1495 = vmatmul.f32.gmra.mxu0 %v1352
        %v1496 = vpop.f32.mrf.mxu0
        %v1497 = vadd.f32 0.0, %v1496
        %1498 = vdwg.mxu0
        %1499 = vmatpush.msra.mxu0 0.0
        %1500 = vmatpush.msra.mxu0 0.0
        %1501 = vmatpush.msra.mxu0 %v1349
        %1502 = vmatpush.msra.mxu0 %v1345
        %1503 = vmatpush.msra.mxu0 %v1341
        %1504 = vmatpush.msra.mxu0 %v1337
        %1505 = vmatpush.msra.mxu0 %v1333
        %1506 = vmatpush.msra.mxu0 %v1329
        %1507 = vmatpush.msra.mxu0 %v1325
        %1508 = vmatpush.msra.mxu0 %v1321
        %1509 = vmatpush.msra.mxu0 %v1317
        %1510 = vmatpush.msra.mxu0 %v1313
        %1511 = vmatpush.msra.mxu0 %v1309
        %1512 = vmatpush.msra.mxu0 %v1305
        %1513 = vmatpush.msra.mxu0 %v1301
        %1514 = vmatpush.msra.mxu0 %v1297
        %1515 = vmatmul.f32.gmra.mxu0 %v1357
        %v1516 = vpop.f32.mrf.mxu0
        %v1517 = vadd.f32 %v1497, %v1516
        %1518 = vdwg.mxu0
        %v1519 = vadd.f32 %v1225, %v1397
        %v1520 = vadd.f32 %v1226, %v1437
        %v1521 = vadd.f32 %v1227, %v1477
        %v1522 = vadd.f32 %v1228, %v1517
        %s1523 = scalar_lea.vmem [#allocation7], 2880
        %v1524 = vld [vmem:[%s1523] sm:$0xff]
        %v1525 = vld [vmem:[%s1523 + $0x8] sm:$0xff]
        %v1526 = vld [vmem:[%s1523 + $0x10] sm:$0xff]
        %v1527 = vld [vmem:[%s1523 + $0x18] sm:$0xff]
        %v1528 = vld [vmem:[%s1523 + $0x20] sm:$0xff]
        %v1529 = vld [vmem:[%s1523 + $0x28] sm:$0xff]
        %v1530 = vld [vmem:[%s1523 + $0x30] sm:$0xff]
        %v1531 = vld [vmem:[%s1523 + $0x38] sm:$0xff]
        %v1532 = vld [vmem:[%s1523 + $0x40] sm:$0xff]
        %v1533 = vld [vmem:[%s1523 + $0x48] sm:$0xff]
        %v1534 = vld [vmem:[%s1523 + $0x50] sm:$0xff]
        %v1535 = vld [vmem:[%s1523 + $0x58] sm:$0xff]
        %v1536 = vld [vmem:[%s1523 + $0x60] sm:$0xff]
        %v1537 = vld [vmem:[%s1523 + $0x68] sm:$0xff]
        %v1538 = vld [vmem:[%s1523 + $0x70] sm:$0xff]
        %v1539 = vld [vmem:[%s1523 + $0x78] sm:$0xff]
        %v1540 = vld [vmem:[%s1523 + $0x80] sm:$0xff]
        %v1541 = vld [vmem:[%s1523 + $0x88] sm:$0xff]
        %v1542 = vld [vmem:[%s1523 + $0x90] sm:$0xff]
        %v1543 = vld [vmem:[%s1523 + $0x98] sm:$0xff]
        %v1544 = vld [vmem:[%s1523 + $0xa0] sm:$0xff]
        %v1545 = vld [vmem:[%s1523 + $0xa8] sm:$0xff]
        %v1546 = vld [vmem:[%s1523 + $0xb0] sm:$0xff]
        %v1547 = vld [vmem:[%s1523 + $0xb8] sm:$0xff]
        %v1548 = vld [vmem:[%s1523 + $0xc0] sm:$0xff]
        %v1549 = vld [vmem:[%s1523 + $0xc8] sm:$0xff]
        %v1550 = vld [vmem:[%s1523 + $0xd0] sm:$0xff]
        %v1551 = vld [vmem:[%s1523 + $0xd8] sm:$0xff]
        %v1552 = vld [vmem:[%s1523 + $0xe0] sm:$0xff]
        %v1553 = vld [vmem:[%s1523 + $0xe8] sm:$0xff]
        %v1554 = vld [vmem:[%s1523 + $0xf0] sm:$0xff]
        %v1555 = vld [vmem:[%s1523 + $0xf8] sm:$0xff]
        %v1556 = vld [vmem:[%s1523 + $0x100] sm:$0xff]
        %v1557 = vld [vmem:[%s1523 + $0x108] sm:$0xff]
        %v1558 = vld [vmem:[%s1523 + $0x110] sm:$0xff]
        %v1559 = vld [vmem:[%s1523 + $0x118] sm:$0xff]
        %v1560 = vld [vmem:[%s1523 + $0x120] sm:$0xff]
        %v1561 = vld [vmem:[%s1523 + $0x128] sm:$0xff]
        %v1562 = vld [vmem:[%s1523 + $0x130] sm:$0xff]
        %v1563 = vld [vmem:[%s1523 + $0x138] sm:$0xff]
        %v1564 = vld [vmem:[%s1523 + $0x140] sm:$0xff]
        %v1565 = vld [vmem:[%s1523 + $0x148] sm:$0xff]
        %v1566 = vld [vmem:[%s1523 + $0x150] sm:$0xff]
        %v1567 = vld [vmem:[%s1523 + $0x158] sm:$0xff]
        %v1568 = vld [vmem:[%s1523 + $0x160] sm:$0xff]
        %v1569 = vld [vmem:[%s1523 + $0x168] sm:$0xff]
        %v1570 = vld [vmem:[%s1523 + $0x170] sm:$0xff]
        %v1571 = vld [vmem:[%s1523 + $0x178] sm:$0xff]
        %v1572 = vld [vmem:[%s1523 + $0x180] sm:$0xff]
        %v1573 = vld [vmem:[%s1523 + $0x188] sm:$0xff]
        %v1574 = vld [vmem:[%s1523 + $0x190] sm:$0xff]
        %v1575 = vld [vmem:[%s1523 + $0x198] sm:$0xff]
        %v1576 = vld [vmem:[%s1523 + $0x1a0] sm:$0xff]
        %v1577 = vld [vmem:[%s1523 + $0x1a8] sm:$0xff]
        %v1578 = vld [vmem:[%s1523 + $0x1b0] sm:$0xff]
        %v1579 = vld [vmem:[%s1523 + $0x1b8] sm:$0xff]
        %v1580 = vld [vmem:[%s1523 + $0x1c0] sm:$0xff]
        %v1581 = vld [vmem:[%s1523 + $0x1c8] sm:$0xff]
        %v1582 = vld [vmem:[%s1523 + $0x1d0] sm:$0xff]
        %v1583 = vld [vmem:[%s1523 + $0x1d8] sm:$0xff]
        %v1584 = vld [vmem:[%s1523 + $0x1e0] sm:$0xff]
        %v1585 = vld [vmem:[%s1523 + $0x1e8] sm:$0xff]
        %v1586 = vld [vmem:[%s1523 + $0x1f0] sm:$0xff]
        %v1587 = vld [vmem:[%s1523 + $0x1f8] sm:$0xff]
        %v1588 = vld [vmem:[%s1523 + $0x200] sm:$0xff]
        %v1589 = vld [vmem:[%s1523 + $0x208] sm:$0xff]
        %v1590 = vld [vmem:[%s1523 + $0x210] sm:$0xff]
        %v1591 = vld [vmem:[%s1523 + $0x218] sm:$0xff]
        %v1592 = vld [vmem:[%s1523 + $0x220] sm:$0xff]
        %v1593 = vld [vmem:[%s1523 + $0x228] sm:$0xff]
        %v1594 = vld [vmem:[%s1523 + $0x230] sm:$0xff]
        %v1595 = vld [vmem:[%s1523 + $0x238] sm:$0xff]
        %v1596 = vld [vmem:[%s1523 + $0x240] sm:$0xff]
        %v1597 = vld [vmem:[%s1523 + $0x248] sm:$0xff]
        %v1598 = vld [vmem:[%s1523 + $0x250] sm:$0xff]
        %v1599 = vld [vmem:[%s1523 + $0x258] sm:$0xff]
        %v1600 = vld [vmem:[%s1523 + $0x260] sm:$0xff]
        %v1601 = vld [vmem:[%s1523 + $0x268] sm:$0xff]
        %v1602 = vld [vmem:[%s1523 + $0x270] sm:$0xff]
        %v1603 = vld [vmem:[%s1523 + $0x278] sm:$0xff]
        %v1604 = vld [vmem:[%s1523 + $0x280] sm:$0xff]
        %v1605 = vld [vmem:[%s1523 + $0x288] sm:$0xff]
        %v1606 = vld [vmem:[%s1523 + $0x290] sm:$0xff]
        %v1607 = vld [vmem:[%s1523 + $0x298] sm:$0xff]
        %v1608 = vld [vmem:[%s1523 + $0x2a0] sm:$0xff]
        %v1609 = vld [vmem:[%s1523 + $0x2a8] sm:$0xff]
        %v1610 = vld [vmem:[%s1523 + $0x2b0] sm:$0xff]
        %v1611 = vld [vmem:[%s1523 + $0x2b8] sm:$0xff]
        %v1612 = vld [vmem:[%s1523 + $0x2c0] sm:$0xff]
        %v1613 = vld [vmem:[%s1523 + $0x2c8] sm:$0xff]
        %v1614 = vld [vmem:[%s1523 + $0x2d0] sm:$0xff]
        %v1615 = vld [vmem:[%s1523 + $0x2d8] sm:$0xff]
        %v1616 = vld [vmem:[%s1523 + $0x2e0] sm:$0xff]
        %v1617 = vld [vmem:[%s1523 + $0x2e8] sm:$0xff]
        %v1618 = vld [vmem:[%s1523 + $0x2f0] sm:$0xff]
        %v1619 = vld [vmem:[%s1523 + $0x2f8] sm:$0xff]
        %v1620 = vld [vmem:[%s1523 + $0x300] sm:$0xff]
        %v1621 = vld [vmem:[%s1523 + $0x308] sm:$0xff]
        %v1622 = vld [vmem:[%s1523 + $0x310] sm:$0xff]
        %v1623 = vld [vmem:[%s1523 + $0x318] sm:$0xff]
        %v1624 = vld [vmem:[%s1523 + $0x320] sm:$0xff]
        %v1625 = vld [vmem:[%s1523 + $0x328] sm:$0xff]
        %v1626 = vld [vmem:[%s1523 + $0x330] sm:$0xff]
        %v1627 = vld [vmem:[%s1523 + $0x338] sm:$0xff]
        %v1628 = vld [vmem:[%s1523 + $0x340] sm:$0xff]
        %v1629 = vld [vmem:[%s1523 + $0x348] sm:$0xff]
        %v1630 = vld [vmem:[%s1523 + $0x350] sm:$0xff]
        %v1631 = vld [vmem:[%s1523 + $0x358] sm:$0xff]
        %v1632 = vld [vmem:[%s1523 + $0x360] sm:$0xff]
        %v1633 = vld [vmem:[%s1523 + $0x368] sm:$0xff]
        %v1634 = vld [vmem:[%s1523 + $0x370] sm:$0xff]
        %v1635 = vld [vmem:[%s1523 + $0x378] sm:$0xff]
        %v1636 = vld [vmem:[%s1523 + $0x380] sm:$0xff]
        %v1637 = vld [vmem:[%s1523 + $0x388] sm:$0xff]
        %v1638 = vld [vmem:[%s1523 + $0x390] sm:$0xff]
        %v1639 = vld [vmem:[%s1523 + $0x398] sm:$0xff]
        %v1640 = vld [vmem:[%s1523 + $0x3a0] sm:$0xff]
        %v1641 = vld [vmem:[%s1523 + $0x3a8] sm:$0xff]
        %v1642 = vld [vmem:[%s1523 + $0x3b0] sm:$0xff]
        %v1643 = vld [vmem:[%s1523 + $0x3b8] sm:$0xff]
        %v1644 = vrot.slane %v630, 3
        %v1645 = vrot.slane %v632, 3
        %v1646 = vsel %vm509, %v1644, %v1645
        %v1647 = vrot.slane %v631, 3
        %v1648 = vrot.slane %v633, 3
        %v1649 = vsel %vm509, %v1647, %v1648
        %v1651 = vsel %vm764, %v1649, 0
        %1653 = vmatpush.msra.mxu0 %v1584
        %1654 = vmatpush.msra.mxu0 %v1580
        %1655 = vmatpush.msra.mxu0 %v1576
        %1656 = vmatpush.msra.mxu0 %v1572
        %1657 = vmatpush.msra.mxu0 %v1568
        %1658 = vmatpush.msra.mxu0 %v1564
        %1659 = vmatpush.msra.mxu0 %v1560
        %1660 = vmatpush.msra.mxu0 %v1556
        %1661 = vmatpush.msra.mxu0 %v1552
        %1662 = vmatpush.msra.mxu0 %v1548
        %1663 = vmatpush.msra.mxu0 %v1544
        %1664 = vmatpush.msra.mxu0 %v1540
        %1665 = vmatpush.msra.mxu0 %v1536
        %1666 = vmatpush.msra.mxu0 %v1532
        %1667 = vmatpush.msra.mxu0 %v1528
        %1668 = vmatpush.msra.mxu0 %v1524
        %1669 = vmatmul.f32.gmra.mxu0 %v1646
        %v1670 = vpop.f32.mrf.mxu0
        %v1671 = vadd.f32 0.0, %v1670
        %1672 = vdwg.mxu0
        %1673 = vmatpush.msra.mxu0 0.0
        %1674 = vmatpush.msra.mxu0 0.0
        %1675 = vmatpush.msra.mxu0 %v1640
        %1676 = vmatpush.msra.mxu0 %v1636
        %1677 = vmatpush.msra.mxu0 %v1632
        %1678 = vmatpush.msra.mxu0 %v1628
        %1679 = vmatpush.msra.mxu0 %v1624
        %1680 = vmatpush.msra.mxu0 %v1620
        %1681 = vmatpush.msra.mxu0 %v1616
        %1682 = vmatpush.msra.mxu0 %v1612
        %1683 = vmatpush.msra.mxu0 %v1608
        %1684 = vmatpush.msra.mxu0 %v1604
        %1685 = vmatpush.msra.mxu0 %v1600
        %1686 = vmatpush.msra.mxu0 %v1596
        %1687 = vmatpush.msra.mxu0 %v1592
        %1688 = vmatpush.msra.mxu0 %v1588
        %1689 = vmatmul.f32.gmra.mxu0 %v1651
        %v1690 = vpop.f32.mrf.mxu0
        %v1691 = vadd.f32 %v1671, %v1690
        %1692 = vdwg.mxu0
        %1693 = vmatpush.msra.mxu0 %v1585
        %1694 = vmatpush.msra.mxu0 %v1581
        %1695 = vmatpush.msra.mxu0 %v1577
        %1696 = vmatpush.msra.mxu0 %v1573
        %1697 = vmatpush.msra.mxu0 %v1569
        %1698 = vmatpush.msra.mxu0 %v1565
        %1699 = vmatpush.msra.mxu0 %v1561
        %1700 = vmatpush.msra.mxu0 %v1557
        %1701 = vmatpush.msra.mxu0 %v1553
        %1702 = vmatpush.msra.mxu0 %v1549
        %1703 = vmatpush.msra.mxu0 %v1545
        %1704 = vmatpush.msra.mxu0 %v1541
        %1705 = vmatpush.msra.mxu0 %v1537
        %1706 = vmatpush.msra.mxu0 %v1533
        %1707 = vmatpush.msra.mxu0 %v1529
        %1708 = vmatpush.msra.mxu0 %v1525
        %1709 = vmatmul.f32.gmra.mxu0 %v1646
        %v1710 = vpop.f32.mrf.mxu0
        %v1711 = vadd.f32 0.0, %v1710
        %1712 = vdwg.mxu0
        %1713 = vmatpush.msra.mxu0 0.0
        %1714 = vmatpush.msra.mxu0 0.0
        %1715 = vmatpush.msra.mxu0 %v1641
        %1716 = vmatpush.msra.mxu0 %v1637
        %1717 = vmatpush.msra.mxu0 %v1633
        %1718 = vmatpush.msra.mxu0 %v1629
        %1719 = vmatpush.msra.mxu0 %v1625
        %1720 = vmatpush.msra.mxu0 %v1621
        %1721 = vmatpush.msra.mxu0 %v1617
        %1722 = vmatpush.msra.mxu0 %v1613
        %1723 = vmatpush.msra.mxu0 %v1609
        %1724 = vmatpush.msra.mxu0 %v1605
        %1725 = vmatpush.msra.mxu0 %v1601
        %1726 = vmatpush.msra.mxu0 %v1597
        %1727 = vmatpush.msra.mxu0 %v1593
        %1728 = vmatpush.msra.mxu0 %v1589
        %1729 = vmatmul.f32.gmra.mxu0 %v1651
        %v1730 = vpop.f32.mrf.mxu0
        %v1731 = vadd.f32 %v1711, %v1730
        %1732 = vdwg.mxu0
        %1733 = vmatpush.msra.mxu0 %v1586
        %1734 = vmatpush.msra.mxu0 %v1582
        %1735 = vmatpush.msra.mxu0 %v1578
        %1736 = vmatpush.msra.mxu0 %v1574
        %1737 = vmatpush.msra.mxu0 %v1570
        %1738 = vmatpush.msra.mxu0 %v1566
        %1739 = vmatpush.msra.mxu0 %v1562
        %1740 = vmatpush.msra.mxu0 %v1558
        %1741 = vmatpush.msra.mxu0 %v1554
        %1742 = vmatpush.msra.mxu0 %v1550
        %1743 = vmatpush.msra.mxu0 %v1546
        %1744 = vmatpush.msra.mxu0 %v1542
        %1745 = vmatpush.msra.mxu0 %v1538
        %1746 = vmatpush.msra.mxu0 %v1534
        %1747 = vmatpush.msra.mxu0 %v1530
        %1748 = vmatpush.msra.mxu0 %v1526
        %1749 = vmatmul.f32.gmra.mxu0 %v1646
        %v1750 = vpop.f32.mrf.mxu0
        %v1751 = vadd.f32 0.0, %v1750
        %1752 = vdwg.mxu0
        %1753 = vmatpush.msra.mxu0 0.0
        %1754 = vmatpush.msra.mxu0 0.0
        %1755 = vmatpush.msra.mxu0 %v1642
        %1756 = vmatpush.msra.mxu0 %v1638
        %1757 = vmatpush.msra.mxu0 %v1634
        %1758 = vmatpush.msra.mxu0 %v1630
        %1759 = vmatpush.msra.mxu0 %v1626
        %1760 = vmatpush.msra.mxu0 %v1622
        %1761 = vmatpush.msra.mxu0 %v1618
        %1762 = vmatpush.msra.mxu0 %v1614
        %1763 = vmatpush.msra.mxu0 %v1610
        %1764 = vmatpush.msra.mxu0 %v1606
        %1765 = vmatpush.msra.mxu0 %v1602
        %1766 = vmatpush.msra.mxu0 %v1598
        %1767 = vmatpush.msra.mxu0 %v1594
        %1768 = vmatpush.msra.mxu0 %v1590
        %1769 = vmatmul.f32.gmra.mxu0 %v1651
        %v1770 = vpop.f32.mrf.mxu0
        %v1771 = vadd.f32 %v1751, %v1770
        %1772 = vdwg.mxu0
        %1773 = vmatpush.msra.mxu0 %v1587
        %1774 = vmatpush.msra.mxu0 %v1583
        %1775 = vmatpush.msra.mxu0 %v1579
        %1776 = vmatpush.msra.mxu0 %v1575
        %1777 = vmatpush.msra.mxu0 %v1571
        %1778 = vmatpush.msra.mxu0 %v1567
        %1779 = vmatpush.msra.mxu0 %v1563
        %1780 = vmatpush.msra.mxu0 %v1559
        %1781 = vmatpush.msra.mxu0 %v1555
        %1782 = vmatpush.msra.mxu0 %v1551
        %1783 = vmatpush.msra.mxu0 %v1547
        %1784 = vmatpush.msra.mxu0 %v1543
        %1785 = vmatpush.msra.mxu0 %v1539
        %1786 = vmatpush.msra.mxu0 %v1535
        %1787 = vmatpush.msra.mxu0 %v1531
        %1788 = vmatpush.msra.mxu0 %v1527
        %1789 = vmatmul.f32.gmra.mxu0 %v1646
        %v1790 = vpop.f32.mrf.mxu0
        %v1791 = vadd.f32 0.0, %v1790
        %1792 = vdwg.mxu0
        %1793 = vmatpush.msra.mxu0 0.0
        %1794 = vmatpush.msra.mxu0 0.0
        %1795 = vmatpush.msra.mxu0 %v1643
        %1796 = vmatpush.msra.mxu0 %v1639
        %1797 = vmatpush.msra.mxu0 %v1635
        %1798 = vmatpush.msra.mxu0 %v1631
        %1799 = vmatpush.msra.mxu0 %v1627
        %1800 = vmatpush.msra.mxu0 %v1623
        %1801 = vmatpush.msra.mxu0 %v1619
        %1802 = vmatpush.msra.mxu0 %v1615
        %1803 = vmatpush.msra.mxu0 %v1611
        %1804 = vmatpush.msra.mxu0 %v1607
        %1805 = vmatpush.msra.mxu0 %v1603
        %1806 = vmatpush.msra.mxu0 %v1599
        %1807 = vmatpush.msra.mxu0 %v1595
        %1808 = vmatpush.msra.mxu0 %v1591
        %1809 = vmatmul.f32.gmra.mxu0 %v1651
        %v1810 = vpop.f32.mrf.mxu0
        %v1811 = vadd.f32 %v1791, %v1810
        %1812 = vdwg.mxu0
        %v1813 = vadd.f32 %v1519, %v1691
        %v1814 = vadd.f32 %v1520, %v1731
        %v1815 = vadd.f32 %v1521, %v1771
        %v1816 = vadd.f32 %v1522, %v1811
        %s1817 = scalar_lea.vmem [#allocation7], 3840
        %v1818 = vld [vmem:[%s1817] sm:$0xff]
        %v1819 = vld [vmem:[%s1817 + $0x8] sm:$0xff]
        %v1820 = vld [vmem:[%s1817 + $0x10] sm:$0xff]
        %v1821 = vld [vmem:[%s1817 + $0x18] sm:$0xff]
        %v1822 = vld [vmem:[%s1817 + $0x20] sm:$0xff]
        %v1823 = vld [vmem:[%s1817 + $0x28] sm:$0xff]
        %v1824 = vld [vmem:[%s1817 + $0x30] sm:$0xff]
        %v1825 = vld [vmem:[%s1817 + $0x38] sm:$0xff]
        %v1826 = vld [vmem:[%s1817 + $0x40] sm:$0xff]
        %v1827 = vld [vmem:[%s1817 + $0x48] sm:$0xff]
        %v1828 = vld [vmem:[%s1817 + $0x50] sm:$0xff]
        %v1829 = vld [vmem:[%s1817 + $0x58] sm:$0xff]
        %v1830 = vld [vmem:[%s1817 + $0x60] sm:$0xff]
        %v1831 = vld [vmem:[%s1817 + $0x68] sm:$0xff]
        %v1832 = vld [vmem:[%s1817 + $0x70] sm:$0xff]
        %v1833 = vld [vmem:[%s1817 + $0x78] sm:$0xff]
        %v1834 = vld [vmem:[%s1817 + $0x80] sm:$0xff]
        %v1835 = vld [vmem:[%s1817 + $0x88] sm:$0xff]
        %v1836 = vld [vmem:[%s1817 + $0x90] sm:$0xff]
        %v1837 = vld [vmem:[%s1817 + $0x98] sm:$0xff]
        %v1838 = vld [vmem:[%s1817 + $0xa0] sm:$0xff]
        %v1839 = vld [vmem:[%s1817 + $0xa8] sm:$0xff]
        %v1840 = vld [vmem:[%s1817 + $0xb0] sm:$0xff]
        %v1841 = vld [vmem:[%s1817 + $0xb8] sm:$0xff]
        %v1842 = vld [vmem:[%s1817 + $0xc0] sm:$0xff]
        %v1843 = vld [vmem:[%s1817 + $0xc8] sm:$0xff]
        %v1844 = vld [vmem:[%s1817 + $0xd0] sm:$0xff]
        %v1845 = vld [vmem:[%s1817 + $0xd8] sm:$0xff]
        %v1846 = vld [vmem:[%s1817 + $0xe0] sm:$0xff]
        %v1847 = vld [vmem:[%s1817 + $0xe8] sm:$0xff]
        %v1848 = vld [vmem:[%s1817 + $0xf0] sm:$0xff]
        %v1849 = vld [vmem:[%s1817 + $0xf8] sm:$0xff]
        %v1850 = vld [vmem:[%s1817 + $0x100] sm:$0xff]
        %v1851 = vld [vmem:[%s1817 + $0x108] sm:$0xff]
        %v1852 = vld [vmem:[%s1817 + $0x110] sm:$0xff]
        %v1853 = vld [vmem:[%s1817 + $0x118] sm:$0xff]
        %v1854 = vld [vmem:[%s1817 + $0x120] sm:$0xff]
        %v1855 = vld [vmem:[%s1817 + $0x128] sm:$0xff]
        %v1856 = vld [vmem:[%s1817 + $0x130] sm:$0xff]
        %v1857 = vld [vmem:[%s1817 + $0x138] sm:$0xff]
        %v1858 = vld [vmem:[%s1817 + $0x140] sm:$0xff]
        %v1859 = vld [vmem:[%s1817 + $0x148] sm:$0xff]
        %v1860 = vld [vmem:[%s1817 + $0x150] sm:$0xff]
        %v1861 = vld [vmem:[%s1817 + $0x158] sm:$0xff]
        %v1862 = vld [vmem:[%s1817 + $0x160] sm:$0xff]
        %v1863 = vld [vmem:[%s1817 + $0x168] sm:$0xff]
        %v1864 = vld [vmem:[%s1817 + $0x170] sm:$0xff]
        %v1865 = vld [vmem:[%s1817 + $0x178] sm:$0xff]
        %v1866 = vld [vmem:[%s1817 + $0x180] sm:$0xff]
        %v1867 = vld [vmem:[%s1817 + $0x188] sm:$0xff]
        %v1868 = vld [vmem:[%s1817 + $0x190] sm:$0xff]
        %v1869 = vld [vmem:[%s1817 + $0x198] sm:$0xff]
        %v1870 = vld [vmem:[%s1817 + $0x1a0] sm:$0xff]
        %v1871 = vld [vmem:[%s1817 + $0x1a8] sm:$0xff]
        %v1872 = vld [vmem:[%s1817 + $0x1b0] sm:$0xff]
        %v1873 = vld [vmem:[%s1817 + $0x1b8] sm:$0xff]
        %v1874 = vld [vmem:[%s1817 + $0x1c0] sm:$0xff]
        %v1875 = vld [vmem:[%s1817 + $0x1c8] sm:$0xff]
        %v1876 = vld [vmem:[%s1817 + $0x1d0] sm:$0xff]
        %v1877 = vld [vmem:[%s1817 + $0x1d8] sm:$0xff]
        %v1878 = vld [vmem:[%s1817 + $0x1e0] sm:$0xff]
        %v1879 = vld [vmem:[%s1817 + $0x1e8] sm:$0xff]
        %v1880 = vld [vmem:[%s1817 + $0x1f0] sm:$0xff]
        %v1881 = vld [vmem:[%s1817 + $0x1f8] sm:$0xff]
        %v1882 = vld [vmem:[%s1817 + $0x200] sm:$0xff]
        %v1883 = vld [vmem:[%s1817 + $0x208] sm:$0xff]
        %v1884 = vld [vmem:[%s1817 + $0x210] sm:$0xff]
        %v1885 = vld [vmem:[%s1817 + $0x218] sm:$0xff]
        %v1886 = vld [vmem:[%s1817 + $0x220] sm:$0xff]
        %v1887 = vld [vmem:[%s1817 + $0x228] sm:$0xff]
        %v1888 = vld [vmem:[%s1817 + $0x230] sm:$0xff]
        %v1889 = vld [vmem:[%s1817 + $0x238] sm:$0xff]
        %v1890 = vld [vmem:[%s1817 + $0x240] sm:$0xff]
        %v1891 = vld [vmem:[%s1817 + $0x248] sm:$0xff]
        %v1892 = vld [vmem:[%s1817 + $0x250] sm:$0xff]
        %v1893 = vld [vmem:[%s1817 + $0x258] sm:$0xff]
        %v1894 = vld [vmem:[%s1817 + $0x260] sm:$0xff]
        %v1895 = vld [vmem:[%s1817 + $0x268] sm:$0xff]
        %v1896 = vld [vmem:[%s1817 + $0x270] sm:$0xff]
        %v1897 = vld [vmem:[%s1817 + $0x278] sm:$0xff]
        %v1898 = vld [vmem:[%s1817 + $0x280] sm:$0xff]
        %v1899 = vld [vmem:[%s1817 + $0x288] sm:$0xff]
        %v1900 = vld [vmem:[%s1817 + $0x290] sm:$0xff]
        %v1901 = vld [vmem:[%s1817 + $0x298] sm:$0xff]
        %v1902 = vld [vmem:[%s1817 + $0x2a0] sm:$0xff]
        %v1903 = vld [vmem:[%s1817 + $0x2a8] sm:$0xff]
        %v1904 = vld [vmem:[%s1817 + $0x2b0] sm:$0xff]
        %v1905 = vld [vmem:[%s1817 + $0x2b8] sm:$0xff]
        %v1906 = vld [vmem:[%s1817 + $0x2c0] sm:$0xff]
        %v1907 = vld [vmem:[%s1817 + $0x2c8] sm:$0xff]
        %v1908 = vld [vmem:[%s1817 + $0x2d0] sm:$0xff]
        %v1909 = vld [vmem:[%s1817 + $0x2d8] sm:$0xff]
        %v1910 = vld [vmem:[%s1817 + $0x2e0] sm:$0xff]
        %v1911 = vld [vmem:[%s1817 + $0x2e8] sm:$0xff]
        %v1912 = vld [vmem:[%s1817 + $0x2f0] sm:$0xff]
        %v1913 = vld [vmem:[%s1817 + $0x2f8] sm:$0xff]
        %v1914 = vld [vmem:[%s1817 + $0x300] sm:$0xff]
        %v1915 = vld [vmem:[%s1817 + $0x308] sm:$0xff]
        %v1916 = vld [vmem:[%s1817 + $0x310] sm:$0xff]
        %v1917 = vld [vmem:[%s1817 + $0x318] sm:$0xff]
        %v1918 = vld [vmem:[%s1817 + $0x320] sm:$0xff]
        %v1919 = vld [vmem:[%s1817 + $0x328] sm:$0xff]
        %v1920 = vld [vmem:[%s1817 + $0x330] sm:$0xff]
        %v1921 = vld [vmem:[%s1817 + $0x338] sm:$0xff]
        %v1922 = vld [vmem:[%s1817 + $0x340] sm:$0xff]
        %v1923 = vld [vmem:[%s1817 + $0x348] sm:$0xff]
        %v1924 = vld [vmem:[%s1817 + $0x350] sm:$0xff]
        %v1925 = vld [vmem:[%s1817 + $0x358] sm:$0xff]
        %v1926 = vld [vmem:[%s1817 + $0x360] sm:$0xff]
        %v1927 = vld [vmem:[%s1817 + $0x368] sm:$0xff]
        %v1928 = vld [vmem:[%s1817 + $0x370] sm:$0xff]
        %v1929 = vld [vmem:[%s1817 + $0x378] sm:$0xff]
        %v1930 = vld [vmem:[%s1817 + $0x380] sm:$0xff]
        %v1931 = vld [vmem:[%s1817 + $0x388] sm:$0xff]
        %v1932 = vld [vmem:[%s1817 + $0x390] sm:$0xff]
        %v1933 = vld [vmem:[%s1817 + $0x398] sm:$0xff]
        %v1934 = vld [vmem:[%s1817 + $0x3a0] sm:$0xff]
        %v1935 = vld [vmem:[%s1817 + $0x3a8] sm:$0xff]
        %v1936 = vld [vmem:[%s1817 + $0x3b0] sm:$0xff]
        %v1937 = vld [vmem:[%s1817 + $0x3b8] sm:$0xff]
        %v1938 = vrot.slane %v630, 4
        %v1939 = vrot.slane %v632, 4
        %v1940 = vsel %vm572, %v1938, %v1939
        %v1941 = vrot.slane %v631, 4
        %v1942 = vrot.slane %v633, 4
        %v1943 = vsel %vm572, %v1941, %v1942
        %v1945 = vsel %vm764, %v1943, 0
        %1947 = vmatpush.msra.mxu0 %v1878
        %1948 = vmatpush.msra.mxu0 %v1874
        %1949 = vmatpush.msra.mxu0 %v1870
        %1950 = vmatpush.msra.mxu0 %v1866
        %1951 = vmatpush.msra.mxu0 %v1862
        %1952 = vmatpush.msra.mxu0 %v1858
        %1953 = vmatpush.msra.mxu0 %v1854
        %1954 = vmatpush.msra.mxu0 %v1850
        %1955 = vmatpush.msra.mxu0 %v1846
        %1956 = vmatpush.msra.mxu0 %v1842
        %1957 = vmatpush.msra.mxu0 %v1838
        %1958 = vmatpush.msra.mxu0 %v1834
        %1959 = vmatpush.msra.mxu0 %v1830
        %1960 = vmatpush.msra.mxu0 %v1826
        %1961 = vmatpush.msra.mxu0 %v1822
        %1962 = vmatpush.msra.mxu0 %v1818
        %1963 = vmatmul.f32.gmra.mxu0 %v1940
        %v1964 = vpop.f32.mrf.mxu0
        %v1965 = vadd.f32 0.0, %v1964
        %1966 = vdwg.mxu0
        %1967 = vmatpush.msra.mxu0 0.0
        %1968 = vmatpush.msra.mxu0 0.0
        %1969 = vmatpush.msra.mxu0 %v1934
        %1970 = vmatpush.msra.mxu0 %v1930
        %1971 = vmatpush.msra.mxu0 %v1926
        %1972 = vmatpush.msra.mxu0 %v1922
        %1973 = vmatpush.msra.mxu0 %v1918
        %1974 = vmatpush.msra.mxu0 %v1914
        %1975 = vmatpush.msra.mxu0 %v1910
        %1976 = vmatpush.msra.mxu0 %v1906
        %1977 = vmatpush.msra.mxu0 %v1902
        %1978 = vmatpush.msra.mxu0 %v1898
        %1979 = vmatpush.msra.mxu0 %v1894
        %1980 = vmatpush.msra.mxu0 %v1890
        %1981 = vmatpush.msra.mxu0 %v1886
        %1982 = vmatpush.msra.mxu0 %v1882
        %1983 = vmatmul.f32.gmra.mxu0 %v1945
        %v1984 = vpop.f32.mrf.mxu0
        %v1985 = vadd.f32 %v1965, %v1984
        %1986 = vdwg.mxu0
        %1987 = vmatpush.msra.mxu0 %v1879
        %1988 = vmatpush.msra.mxu0 %v1875
        %1989 = vmatpush.msra.mxu0 %v1871
        %1990 = vmatpush.msra.mxu0 %v1867
        %1991 = vmatpush.msra.mxu0 %v1863
        %1992 = vmatpush.msra.mxu0 %v1859
        %1993 = vmatpush.msra.mxu0 %v1855
        %1994 = vmatpush.msra.mxu0 %v1851
        %1995 = vmatpush.msra.mxu0 %v1847
        %1996 = vmatpush.msra.mxu0 %v1843
        %1997 = vmatpush.msra.mxu0 %v1839
        %1998 = vmatpush.msra.mxu0 %v1835
        %1999 = vmatpush.msra.mxu0 %v1831
        %2000 = vmatpush.msra.mxu0 %v1827
        %2001 = vmatpush.msra.mxu0 %v1823
        %2002 = vmatpush.msra.mxu0 %v1819
        %2003 = vmatmul.f32.gmra.mxu0 %v1940
        %v2004 = vpop.f32.mrf.mxu0
        %v2005 = vadd.f32 0.0, %v2004
        %2006 = vdwg.mxu0
        %2007 = vmatpush.msra.mxu0 0.0
        %2008 = vmatpush.msra.mxu0 0.0
        %2009 = vmatpush.msra.mxu0 %v1935
        %2010 = vmatpush.msra.mxu0 %v1931
        %2011 = vmatpush.msra.mxu0 %v1927
        %2012 = vmatpush.msra.mxu0 %v1923
        %2013 = vmatpush.msra.mxu0 %v1919
        %2014 = vmatpush.msra.mxu0 %v1915
        %2015 = vmatpush.msra.mxu0 %v1911
        %2016 = vmatpush.msra.mxu0 %v1907
        %2017 = vmatpush.msra.mxu0 %v1903
        %2018 = vmatpush.msra.mxu0 %v1899
        %2019 = vmatpush.msra.mxu0 %v1895
        %2020 = vmatpush.msra.mxu0 %v1891
        %2021 = vmatpush.msra.mxu0 %v1887
        %2022 = vmatpush.msra.mxu0 %v1883
        %2023 = vmatmul.f32.gmra.mxu0 %v1945
        %v2024 = vpop.f32.mrf.mxu0
        %v2025 = vadd.f32 %v2005, %v2024
        %2026 = vdwg.mxu0
        %2027 = vmatpush.msra.mxu0 %v1880
        %2028 = vmatpush.msra.mxu0 %v1876
        %2029 = vmatpush.msra.mxu0 %v1872
        %2030 = vmatpush.msra.mxu0 %v1868
        %2031 = vmatpush.msra.mxu0 %v1864
        %2032 = vmatpush.msra.mxu0 %v1860
        %2033 = vmatpush.msra.mxu0 %v1856
        %2034 = vmatpush.msra.mxu0 %v1852
        %2035 = vmatpush.msra.mxu0 %v1848
        %2036 = vmatpush.msra.mxu0 %v1844
        %2037 = vmatpush.msra.mxu0 %v1840
        %2038 = vmatpush.msra.mxu0 %v1836
        %2039 = vmatpush.msra.mxu0 %v1832
        %2040 = vmatpush.msra.mxu0 %v1828
        %2041 = vmatpush.msra.mxu0 %v1824
        %2042 = vmatpush.msra.mxu0 %v1820
        %2043 = vmatmul.f32.gmra.mxu0 %v1940
        %v2044 = vpop.f32.mrf.mxu0
        %v2045 = vadd.f32 0.0, %v2044
        %2046 = vdwg.mxu0
        %2047 = vmatpush.msra.mxu0 0.0
        %2048 = vmatpush.msra.mxu0 0.0
        %2049 = vmatpush.msra.mxu0 %v1936
        %2050 = vmatpush.msra.mxu0 %v1932
        %2051 = vmatpush.msra.mxu0 %v1928
        %2052 = vmatpush.msra.mxu0 %v1924
        %2053 = vmatpush.msra.mxu0 %v1920
        %2054 = vmatpush.msra.mxu0 %v1916
        %2055 = vmatpush.msra.mxu0 %v1912
        %2056 = vmatpush.msra.mxu0 %v1908
        %2057 = vmatpush.msra.mxu0 %v1904
        %2058 = vmatpush.msra.mxu0 %v1900
        %2059 = vmatpush.msra.mxu0 %v1896
        %2060 = vmatpush.msra.mxu0 %v1892
        %2061 = vmatpush.msra.mxu0 %v1888
        %2062 = vmatpush.msra.mxu0 %v1884
        %2063 = vmatmul.f32.gmra.mxu0 %v1945
        %v2064 = vpop.f32.mrf.mxu0
        %v2065 = vadd.f32 %v2045, %v2064
        %2066 = vdwg.mxu0
        %2067 = vmatpush.msra.mxu0 %v1881
        %2068 = vmatpush.msra.mxu0 %v1877
        %2069 = vmatpush.msra.mxu0 %v1873
        %2070 = vmatpush.msra.mxu0 %v1869
        %2071 = vmatpush.msra.mxu0 %v1865
        %2072 = vmatpush.msra.mxu0 %v1861
        %2073 = vmatpush.msra.mxu0 %v1857
        %2074 = vmatpush.msra.mxu0 %v1853
        %2075 = vmatpush.msra.mxu0 %v1849
        %2076 = vmatpush.msra.mxu0 %v1845
        %2077 = vmatpush.msra.mxu0 %v1841
        %2078 = vmatpush.msra.mxu0 %v1837
        %2079 = vmatpush.msra.mxu0 %v1833
        %2080 = vmatpush.msra.mxu0 %v1829
        %2081 = vmatpush.msra.mxu0 %v1825
        %2082 = vmatpush.msra.mxu0 %v1821
        %2083 = vmatmul.f32.gmra.mxu0 %v1940
        %v2084 = vpop.f32.mrf.mxu0
        %v2085 = vadd.f32 0.0, %v2084
        %2086 = vdwg.mxu0
        %2087 = vmatpush.msra.mxu0 0.0
        %2088 = vmatpush.msra.mxu0 0.0
        %2089 = vmatpush.msra.mxu0 %v1937
        %2090 = vmatpush.msra.mxu0 %v1933
        %2091 = vmatpush.msra.mxu0 %v1929
        %2092 = vmatpush.msra.mxu0 %v1925
        %2093 = vmatpush.msra.mxu0 %v1921
        %2094 = vmatpush.msra.mxu0 %v1917
        %2095 = vmatpush.msra.mxu0 %v1913
        %2096 = vmatpush.msra.mxu0 %v1909
        %2097 = vmatpush.msra.mxu0 %v1905
        %2098 = vmatpush.msra.mxu0 %v1901
        %2099 = vmatpush.msra.mxu0 %v1897
        %2100 = vmatpush.msra.mxu0 %v1893
        %2101 = vmatpush.msra.mxu0 %v1889
        %2102 = vmatpush.msra.mxu0 %v1885
        %2103 = vmatmul.f32.gmra.mxu0 %v1945
        %v2104 = vpop.f32.mrf.mxu0
        %v2105 = vadd.f32 %v2085, %v2104
        %2106 = vdwg.mxu0
        %v2107 = vadd.f32 %v1813, %v1985
        %v2108 = vadd.f32 %v1814, %v2025
        %v2109 = vadd.f32 %v1815, %v2065
        %v2110 = vadd.f32 %v1816, %v2105
        %v2111 = vmax.f32 %v2107, 0.0
        %v2112 = vmax.f32 %v2108, 0.0
        %v2113 = vmax.f32 %v2109, 0.0
        %v2114 = vmax.f32 %v2110, 0.0
        %2115 = vst [vmem:[%s308] sm:$0xff] %v2111
        %2116 = vst [vmem:[%s308 + $0x8] sm:$0xff] %v2112
        %2117 = vst [vmem:[%s308 + $0x10] sm:$0xff] %v2113
        %2118 = vst [vmem:[%s308 + $0x18] sm:$0xff] %v2114
        %p2119 = scmp.lt.s32.totalorder %s21, 1
        %s2120 = scalar_select %p2119, %s21, 1
        %s2121 = smul.addr %s2120, 4
        %s2122 = smul.addr %s2121, 8
        %s2123 = scalar_lea.vmem %s5, %s2122
        // Predicated region
        $region61: #{simple_model_forward.1} parent=39 // pred_check
          %p2124 = pneg %p149
        $region62: #{simple_model_forward.1} parent=39 // pred_check_branch
          %2126 = sbr.rel (%p2124) target = $region64
        $region63: #{simple_model_forward.1} parent=39 // pred_region
          _
        $region64: #{simple_model_forward.1} parent=39 // pred_fallthru
          _
      $region40: #{simple_model_forward.1} parent=5 // pred_fallthru
        _
      %p2127 = scmp.le.s32.totalorder 2, %s16
      // Predicated region
      $region65: #{simple_model_forward.1} parent=5 // pred_check
        %p2128 = pneg %p2127
      $region66: #{simple_model_forward.1} parent=5 // pred_check_branch
        %2130 = sbr.rel (%p2128) target = $region68
      $region67: #{simple_model_forward.1} parent=5 // pred_region
        %s2131 = ssub.s32 %s16, 2
        // Predicated region
        $region69: #{simple_model_forward.1} parent=67 // pred_check
          %p2132 = pneg %p155
        $region70: #{simple_model_forward.1} parent=67 // pred_check_branch
          %2134 = sbr.rel (%p2132) target = $region72
        $region71: #{simple_model_forward.1} parent=67 // pred_region
          %p2135 = scmp.lt.s32.totalorder %s22, 1
          %s2136 = scalar_select %p2135, %s22, 1
          %s2137 = smul.addr %s2136, 4
          %s2138 = smul.addr %s2137, 8
          %s2139 = scalar_lea.vmem %s5, %s2138
        $region72: #{simple_model_forward.1} parent=67 // pred_fallthru
          _
      $region68: #{simple_model_forward.1} parent=5 // pred_fallthru
        _
    $region6: #{simple_model_forward.1} parent=1 // loop_footer
      %s20 = sadd.s32 1, %s16
    $region7: #{simple_model_forward.1} parent=1 // loop_footer_branch
      %15 = sbr.rel target = $region3
    $region8: #{simple_model_forward.1} parent=1 // loop_exit
      _
    %2140 = vsyncpa [#allocation3], 1
    %s2141 = scalar_lea.sflag [#allocation3], 1
    %2142 = vsyncpa %s2141, 1
    %2143 = vsyncpa [#allocation5], 1
    %2144 = vsyncpa [#allocation8], 1

</llo_original>
